<compile_context>
chip_gen: v5e
topology: v5e:2x2
jax: 0.10.0
libtpu: 0.0.40
codegen_flags: <defaults>
</compile_context>

<pallas_src>
import math

import jax
import jax.numpy as jnp
from jax.experimental import pallas as pl
from jax.experimental.pallas import tpu as pltpu

# ---- network config (stands in for cfg.network) ----
L_FREQ = 4                                  # uv frequency-encoder octaves
UV_DIM = 2
INPUT_CH = UV_DIM + 2 * UV_DIM * L_FREQ     # include_input + sin/cos -> 18
D = 4                                       # number of backbone layers
W = 32                                      # hidden width
TM_DEFAULT = 4096                           # row tile (tunable); tiny VMEM footprint even on v7x


def _round_up(x, m):
    return ((x + m - 1) // m) * m


def positional_encode(uv):
    """Row-major NeRF-style encoding (N, 2) -> (N, INPUT_CH); reference only.
    Channel order matches the in-kernel (transposed) encoder exactly."""
    freqs = (2.0 ** jnp.arange(L_FREQ)).astype(uv.dtype)          # (L,)
    ang = uv[:, None, :] * freqs[:, None]                         # (N, L, 2)
    enc = jnp.concatenate([jnp.sin(ang), jnp.cos(ang)], axis=-1)  # (N, L, 4)
    return jnp.concatenate([uv, enc.reshape(uv.shape[0], -1)], axis=-1)


def mlp_kernel(uv_ref, w0_ref, b0_ref, wh_ref, bh_ref, wo_ref, bo_ref, o_ref):
    """Encode + backbone MLP + sigmoid head for one column tile.

    Transposed layout: uv tile (2, TM), activations (ch, TM), output tile (3, TM).
    sin/cos/exp land on the (otherwise idle) EUP; matmuls hit the MXU; stores are lane-dense.
    """
    uv_t = uv_ref[...].astype(jnp.float32)                        # (2, TM)
    parts = [uv_t]
    for l in range(L_FREQ):                                       # short static loop
        ang = uv_t * jnp.float32(2.0 ** l)                        # (2, TM)
        parts.append(jnp.sin(ang))
        parts.append(jnp.cos(ang))
    x = jnp.concatenate(parts, axis=0)                            # (INPUT_CH, TM)

    h = jnp.dot(w0_ref[...], x, preferred_element_type=jnp.float32) + b0_ref[...]
    h = jnp.maximum(h, 0.0)                                       # (W, TM)
    for i in range(D - 1):
        h = jnp.dot(wh_ref[i], h, preferred_element_type=jnp.float32) + bh_ref[i]
        h = jnp.maximum(h, 0.0)
    out = jnp.dot(wo_ref[...], h, preferred_element_type=jnp.float32) + bo_ref[...]
    o_ref[...] = jax.nn.sigmoid(out).astype(o_ref.dtype)          # (3, TM)


def render_pallas(uv_flat, params, *, tm=TM_DEFAULT):
    """uv_flat: (N, 2), any N. Returns rgb (N, 3)."""
    w0, b0, wh, bh, wo, bo = params
    n = uv_flat.shape[0]

    # Big tile to amortize grid-step overhead, but keep >=2 grid steps for small N so both
    # v7x TensorCores get work; ragged N handled by padding the (tiny) uv input.
    tm_eff = int(min(tm, max(128, _round_up((n + 1) // 2, 128))))
    n_pad = _round_up(n, tm_eff)

    uv_t = uv_flat.T                                              # (2, N) lane-dense layout
    if n_pad != n:
        uv_t = jnp.pad(uv_t, ((0, 0), (0, n_pad - n)))
    grid = (n_pad // tm_eff,)

    cost = pl.CostEstimate(
        flops=2 * n_pad * (INPUT_CH * W + (D - 1) * W * W + W * 3),
        transcendentals=n_pad * (4 * L_FREQ + 3),                 # sin/cos + sigmoid
        bytes_accessed=n_pad * (UV_DIM + 3) * 4,
    )

    out_t = pl.pallas_call(
        mlp_kernel,
        out_shape=jax.ShapeDtypeStruct((3, n_pad), jnp.float32),
        grid_spec=pltpu.PrefetchScalarGridSpec(
            num_scalar_prefetch=0,
            grid=grid,
            in_specs=[
                pl.BlockSpec((UV_DIM, tm_eff), lambda i: (0, i)),  # uv tile (2, TM)
                pl.BlockSpec(w0.shape, lambda i: (0, 0)),          # (W, INPUT_CH)
                pl.BlockSpec(b0.shape, lambda i: (0, 0)),          # (W, 1)
                pl.BlockSpec(wh.shape, lambda i: (0, 0, 0)),       # (D-1, W, W)
                pl.BlockSpec(bh.shape, lambda i: (0, 0, 0)),       # (D-1, W, 1)
                pl.BlockSpec(wo.shape, lambda i: (0, 0)),          # (3, W)
                pl.BlockSpec(bo.shape, lambda i: (0, 0)),          # (3, 1)
            ],
            out_specs=pl.BlockSpec((3, tm_eff), lambda i: (0, i)),  # lane-dense output tile
        ),
        compiler_params=pltpu.CompilerParams(dimension_semantics=("parallel",)),
        cost_estimate=cost,
    )(uv_t, w0, b0, wh, bh, wo, bo)

    return out_t[:, :n].T                                          # (N, 3)


def init_params(key):
    """Deterministic synthetic parameters in PyTorch nn.Linear layout: W (out, in), b (out, 1)."""
    ks = jax.random.split(key, 2 * (D + 1))

    def lin(kw, kb, fan_in, fan_out):
        bound = 1.0 / math.sqrt(fan_in)
        w = jax.random.uniform(kw, (fan_out, fan_in), jnp.float32, -bound, bound)
        b = jax.random.uniform(kb, (fan_out, 1), jnp.float32, -bound, bound)
        return w, b

    w0, b0 = lin(ks[0], ks[1], INPUT_CH, W)
    whs, bhs = [], []
    for i in range(D - 1):
        w, b = lin(ks[2 + 2 * i], ks[3 + 2 * i], W, W)
        whs.append(w)
        bhs.append(b)
    wh = jnp.stack(whs)                     # (D-1, W, W)
    bh = jnp.stack(bhs)                     # (D-1, W, 1)
    wo, bo = lin(ks[2 * D], ks[2 * D + 1], W, 3)
    return (w0, b0, wh, bh, wo, bo)


def network_forward(batch_uv, params, *, tm=TM_DEFAULT):
    """Mirrors Network.forward: batch['uv'] (B, N_pixels, 2) -> {'rgb': (B, N_pixels, 3)}."""
    B, N_pixels, C = batch_uv.shape
    uv_flat = batch_uv.reshape(-1, C)
    rgb = render_pallas(uv_flat, params, tm=tm)   # batchify/chunking handled by the Pallas grid
    return {"rgb": rgb.reshape(B, N_pixels, -1)}


def reference_forward(batch_uv, params):
    """Pure-JAX reference of the same forward pass for a correctness check."""
    w0, b0, wh, bh, wo, bo = params
    x = positional_encode(batch_uv.reshape(-1, batch_uv.shape[-1]))
    h = jnp.maximum(x @ w0.T + b0[:, 0], 0.0)
    for i in range(D - 1):
        h = jnp.maximum(h @ wh[i].T + bh[i, :, 0], 0.0)
    rgb = jax.nn.sigmoid(h @ wo.T + bo[:, 0])
    return rgb.reshape(batch_uv.shape[0], batch_uv.shape[1], -1)


if __name__ == "__main__":
    key = jax.random.PRNGKey(0)
    k_param, k_uv = jax.random.split(key)
    params = init_params(k_param)

    # N = 400 rows: exercises the ragged-N padding path and a 2-step parallel grid.
    B, N_pixels = 2, 200
    uv = jax.random.uniform(k_uv, (B, N_pixels, UV_DIM), jnp.float32)

    out = network_forward(uv, params)
    rgb = jax.block_until_ready(out["rgb"])

    ref = reference_forward(uv, params)
    assert rgb.shape == (B, N_pixels, 3)
    assert jnp.allclose(rgb, ref, rtol=5e-5, atol=5e-5), "mismatch vs reference"
    print("KERNEL_OK")
</pallas_src>

<mosaic_0001>
module attributes {stable_mosaic.version = 11 : i64} {
  func.func @mlp_kernel(%arg0: i32, %arg1: memref<2x256xf32, #tpu.memory_space<vmem>>, %arg2: memref<32x18xf32, #tpu.memory_space<vmem>>, %arg3: memref<32x1xf32, #tpu.memory_space<vmem>>, %arg4: memref<3x32x32xf32, #tpu.memory_space<vmem>>, %arg5: memref<3x32x1xf32, #tpu.memory_space<vmem>>, %arg6: memref<3x32xf32, #tpu.memory_space<vmem>>, %arg7: memref<3x1xf32, #tpu.memory_space<vmem>>, %arg8: memref<3x256xf32, #tpu.memory_space<vmem>>) attributes {dimension_semantics = [#tpu.dimension_semantics<parallel>], iteration_bounds = array<i64: 2>, scalar_prefetch = 0 : i64, scratch_operands = 0 : i64, tpu.core_type = #tpu.core_type<tc>, window_params = [{transform_indices = @transform_0, window_bounds = array<i64: 2, 256>}, {pipeline_mode = #tpu.pipeline_mode<synchronous>, transform_indices = @transform_1, window_bounds = array<i64: 32, 18>}, {pipeline_mode = #tpu.pipeline_mode<synchronous>, transform_indices = @transform_2, window_bounds = array<i64: 32, 1>}, {pipeline_mode = #tpu.pipeline_mode<synchronous>, transform_indices = @transform_3, window_bounds = array<i64: 3, 32, 32>}, {pipeline_mode = #tpu.pipeline_mode<synchronous>, transform_indices = @transform_4, window_bounds = array<i64: 3, 32, 1>}, {pipeline_mode = #tpu.pipeline_mode<synchronous>, transform_indices = @transform_5, window_bounds = array<i64: 3, 32>}, {pipeline_mode = #tpu.pipeline_mode<synchronous>, transform_indices = @transform_6, window_bounds = array<i64: 3, 1>}, {transform_indices = @transform_7, window_bounds = array<i64: 3, 256>}]} {
    %c0 = arith.constant 0 : index
    %c0_0 = arith.constant 0 : index
    %0 = vector.load %arg1[%c0, %c0_0] : memref<2x256xf32, #tpu.memory_space<vmem>>, vector<2x256xf32>
    %cst = arith.constant 1.000000e+00 : f32
    %1 = vector.broadcast %cst : f32 to vector<2x256xf32>
    %2 = arith.mulf %0, %1 : vector<2x256xf32>
    %3 = math.sin %2 : vector<2x256xf32>
    %4 = math.cos %2 : vector<2x256xf32>
    %cst_1 = arith.constant 2.000000e+00 : f32
    %5 = vector.broadcast %cst_1 : f32 to vector<2x256xf32>
    %6 = arith.mulf %0, %5 : vector<2x256xf32>
    %7 = math.sin %6 : vector<2x256xf32>
    %8 = math.cos %6 : vector<2x256xf32>
    %cst_2 = arith.constant 4.000000e+00 : f32
    %9 = vector.broadcast %cst_2 : f32 to vector<2x256xf32>
    %10 = arith.mulf %0, %9 : vector<2x256xf32>
    %11 = math.sin %10 : vector<2x256xf32>
    %12 = math.cos %10 : vector<2x256xf32>
    %cst_3 = arith.constant 8.000000e+00 : f32
    %13 = vector.broadcast %cst_3 : f32 to vector<2x256xf32>
    %14 = arith.mulf %0, %13 : vector<2x256xf32>
    %15 = math.sin %14 : vector<2x256xf32>
    %16 = math.cos %14 : vector<2x256xf32>
    %17 = tpu.concatenate %0, %3, %4, %7, %8, %11, %12, %15, %16 in 0 : vector<2x256xf32>, vector<2x256xf32>, vector<2x256xf32>, vector<2x256xf32>, vector<2x256xf32>, vector<2x256xf32>, vector<2x256xf32>, vector<2x256xf32>, vector<2x256xf32> -> vector<18x256xf32>
    %c0_4 = arith.constant 0 : index
    %c0_5 = arith.constant 0 : index
    %18 = vector.load %arg2[%c0_4, %c0_5] : memref<32x18xf32, #tpu.memory_space<vmem>>, vector<32x18xf32>
    %cst_6 = arith.constant dense<0.000000e+00> : vector<32x256xf32>
    %19 = tpu.matmul %18, %17, %cst_6 {dimension_numbers = #tpu.dot_dimension_numbers<[1], [0], [0], [1], [0, 0, 1, 1], [], []>} : vector<32x18xf32>, vector<18x256xf32>, vector<32x256xf32> -> vector<32x256xf32>
    %c0_7 = arith.constant 0 : index
    %c0_8 = arith.constant 0 : index
    %20 = vector.load %arg3[%c0_7, %c0_8] : memref<32x1xf32, #tpu.memory_space<vmem>>, vector<32x1xf32>
    %21 = vector.broadcast %20 : vector<32x1xf32> to vector<32x256xf32>
    %22 = arith.addf %19, %21 : vector<32x256xf32>
    %cst_9 = arith.constant 0.000000e+00 : f32
    %23 = vector.broadcast %cst_9 : f32 to vector<32x256xf32>
    %24 = arith.maximumf %22, %23 : vector<32x256xf32>
    %c0_10 = arith.constant 0 : index
    %c0_11 = arith.constant 0 : index
    %c0_12 = arith.constant 0 : index
    %25 = vector.load %arg4[%c0_10, %c0_11, %c0_12] : memref<3x32x32xf32, #tpu.memory_space<vmem>>, vector<1x32x32xf32>
    %26 = vector.shape_cast %25 : vector<1x32x32xf32> to vector<32x32xf32>
    %cst_13 = arith.constant dense<0.000000e+00> : vector<32x256xf32>
    %27 = tpu.matmul %26, %24, %cst_13 {dimension_numbers = #tpu.dot_dimension_numbers<[1], [0], [0], [1], [0, 0, 1, 1], [], []>} : vector<32x32xf32>, vector<32x256xf32>, vector<32x256xf32> -> vector<32x256xf32>
    %c0_14 = arith.constant 0 : index
    %c0_15 = arith.constant 0 : index
    %c0_16 = arith.constant 0 : index
    %28 = vector.load %arg5[%c0_14, %c0_15, %c0_16] : memref<3x32x1xf32, #tpu.memory_space<vmem>>, vector<1x32x1xf32>
    %29 = vector.shape_cast %28 : vector<1x32x1xf32> to vector<32x1xf32>
    %30 = vector.broadcast %29 : vector<32x1xf32> to vector<32x256xf32>
    %31 = arith.addf %27, %30 : vector<32x256xf32>
    %cst_17 = arith.constant 0.000000e+00 : f32
    %32 = vector.broadcast %cst_17 : f32 to vector<32x256xf32>
    %33 = arith.maximumf %31, %32 : vector<32x256xf32>
    %c1 = arith.constant 1 : index
    %c0_18 = arith.constant 0 : index
    %c0_19 = arith.constant 0 : index
    %34 = vector.load %arg4[%c1, %c0_18, %c0_19] : memref<3x32x32xf32, #tpu.memory_space<vmem>>, vector<1x32x32xf32>
    %35 = vector.shape_cast %34 : vector<1x32x32xf32> to vector<32x32xf32>
    %cst_20 = arith.constant dense<0.000000e+00> : vector<32x256xf32>
    %36 = tpu.matmul %35, %33, %cst_20 {dimension_numbers = #tpu.dot_dimension_numbers<[1], [0], [0], [1], [0, 0, 1, 1], [], []>} : vector<32x32xf32>, vector<32x256xf32>, vector<32x256xf32> -> vector<32x256xf32>
    %c1_21 = arith.constant 1 : index
    %c0_22 = arith.constant 0 : index
    %c0_23 = arith.constant 0 : index
    %37 = vector.load %arg5[%c1_21, %c0_22, %c0_23] : memref<3x32x1xf32, #tpu.memory_space<vmem>>, vector<1x32x1xf32>
    %38 = vector.shape_cast %37 : vector<1x32x1xf32> to vector<32x1xf32>
    %39 = vector.broadcast %38 : vector<32x1xf32> to vector<32x256xf32>
    %40 = arith.addf %36, %39 : vector<32x256xf32>
    %cst_24 = arith.constant 0.000000e+00 : f32
    %41 = vector.broadcast %cst_24 : f32 to vector<32x256xf32>
    %42 = arith.maximumf %40, %41 : vector<32x256xf32>
    %c2 = arith.constant 2 : index
    %c0_25 = arith.constant 0 : index
    %c0_26 = arith.constant 0 : index
    %43 = vector.load %arg4[%c2, %c0_25, %c0_26] : memref<3x32x32xf32, #tpu.memory_space<vmem>>, vector<1x32x32xf32>
    %44 = vector.shape_cast %43 : vector<1x32x32xf32> to vector<32x32xf32>
    %cst_27 = arith.constant dense<0.000000e+00> : vector<32x256xf32>
    %45 = tpu.matmul %44, %42, %cst_27 {dimension_numbers = #tpu.dot_dimension_numbers<[1], [0], [0], [1], [0, 0, 1, 1], [], []>} : vector<32x32xf32>, vector<32x256xf32>, vector<32x256xf32> -> vector<32x256xf32>
    %c2_28 = arith.constant 2 : index
    %c0_29 = arith.constant 0 : index
    %c0_30 = arith.constant 0 : index
    %46 = vector.load %arg5[%c2_28, %c0_29, %c0_30] : memref<3x32x1xf32, #tpu.memory_space<vmem>>, vector<1x32x1xf32>
    %47 = vector.shape_cast %46 : vector<1x32x1xf32> to vector<32x1xf32>
    %48 = vector.broadcast %47 : vector<32x1xf32> to vector<32x256xf32>
    %49 = arith.addf %45, %48 : vector<32x256xf32>
    %cst_31 = arith.constant 0.000000e+00 : f32
    %50 = vector.broadcast %cst_31 : f32 to vector<32x256xf32>
    %51 = arith.maximumf %49, %50 : vector<32x256xf32>
    %c0_32 = arith.constant 0 : index
    %c0_33 = arith.constant 0 : index
    %52 = vector.load %arg6[%c0_32, %c0_33] : memref<3x32xf32, #tpu.memory_space<vmem>>, vector<3x32xf32>
    %cst_34 = arith.constant dense<0.000000e+00> : vector<3x256xf32>
    %53 = tpu.matmul %52, %51, %cst_34 {dimension_numbers = #tpu.dot_dimension_numbers<[1], [0], [0], [1], [0, 0, 1, 1], [], []>} : vector<3x32xf32>, vector<32x256xf32>, vector<3x256xf32> -> vector<3x256xf32>
    %c0_35 = arith.constant 0 : index
    %c0_36 = arith.constant 0 : index
    %54 = vector.load %arg7[%c0_35, %c0_36] : memref<3x1xf32, #tpu.memory_space<vmem>>, vector<3x1xf32>
    %55 = vector.broadcast %54 : vector<3x1xf32> to vector<3x256xf32>
    %56 = arith.addf %53, %55 : vector<3x256xf32>
    %57 = arith.negf %56 : vector<3x256xf32>
    %58 = math.exp %57 : vector<3x256xf32>
    %cst_37 = arith.constant 1.000000e+00 : f32
    %59 = vector.broadcast %cst_37 : f32 to vector<3x256xf32>
    %60 = arith.addf %59, %58 : vector<3x256xf32>
    %61 = arith.divf %59, %60 : vector<3x256xf32>
    %c0_38 = arith.constant 0 : index
    %c0_39 = arith.constant 0 : index
    %62 = vector.load %arg8[%c0_38, %c0_39] : memref<3x256xf32, #tpu.memory_space<vmem>>, vector<3x256xf32>
    tpu.vector_store %arg8[%c0_38, %c0_39], %61 {strides = array<i32>} : memref<3x256xf32, #tpu.memory_space<vmem>>, vector<3x256xf32>,
    return
  }
  func.func @transform_0(%arg0: i32) -> (i32, i32) {
    %c0_i32 = arith.constant 0 : i32
    %c0_i32_0 = arith.constant 0 : i32
    return %c0_i32, %arg0 : i32, i32
  }
  func.func @transform_1(%arg0: i32) -> (i32, i32) {
    %c0_i32 = arith.constant 0 : i32
    %c0_i32_0 = arith.constant 0 : i32
    %c0_i32_1 = arith.constant 0 : i32
    return %c0_i32, %c0_i32_0 : i32, i32
  }
  func.func @transform_2(%arg0: i32) -> (i32, i32) {
    %c0_i32 = arith.constant 0 : i32
    %c0_i32_0 = arith.constant 0 : i32
    %c0_i32_1 = arith.constant 0 : i32
    return %c0_i32, %c0_i32_0 : i32, i32
  }
  func.func @transform_3(%arg0: i32) -> (i32, i32, i32) {
    %c0_i32 = arith.constant 0 : i32
    %c0_i32_0 = arith.constant 0 : i32
    %c0_i32_1 = arith.constant 0 : i32
    %c0_i32_2 = arith.constant 0 : i32
    return %c0_i32, %c0_i32_0, %c0_i32_1 : i32, i32, i32
  }
  func.func @transform_4(%arg0: i32) -> (i32, i32, i32) {
    %c0_i32 = arith.constant 0 : i32
    %c0_i32_0 = arith.constant 0 : i32
    %c0_i32_1 = arith.constant 0 : i32
    %c0_i32_2 = arith.constant 0 : i32
    return %c0_i32, %c0_i32_0, %c0_i32_1 : i32, i32, i32
  }
  func.func @transform_5(%arg0: i32) -> (i32, i32) {
    %c0_i32 = arith.constant 0 : i32
    %c0_i32_0 = arith.constant 0 : i32
    %c0_i32_1 = arith.constant 0 : i32
    return %c0_i32, %c0_i32_0 : i32, i32
  }
  func.func @transform_6(%arg0: i32) -> (i32, i32) {
    %c0_i32 = arith.constant 0 : i32
    %c0_i32_0 = arith.constant 0 : i32
    %c0_i32_1 = arith.constant 0 : i32
    return %c0_i32, %c0_i32_0 : i32, i32
  }
  func.func @transform_7(%arg0: i32) -> (i32, i32) {
    %c0_i32 = arith.constant 0 : i32
    %c0_i32_0 = arith.constant 0 : i32
    return %c0_i32, %arg0 : i32, i32
  }
}

</mosaic_0001>

<llo_original>
// kernel: tpu_custom_call.1
$region0: #{tpu_custom_call.1}
  #allocation0 [shape = 'u32[]', space=smem, size = 0x4, offset = 0x4, fixed_abs, tag = 'smem constant byte address 0x4 - core index']
  #allocation1 [shape = 'u32[72,128]{1,0:T(1,128)}', space=vmem, size = 0x9000, scoped, tag = 'internal scratch']
  %s0 = inlined_call_operand.vmem [shape: f32[2,512], index: 0, kind: input, shape index: {}]
  %s1 = inlined_call_operand.vmem [shape: f32[32,18], index: 1, kind: input, shape index: {}]
  %s2 = inlined_call_operand.vmem [shape: f32[32,1], index: 2, kind: input, shape index: {}]
  %s3 = inlined_call_operand.vmem [shape: f32[3,32,32], index: 3, kind: input, shape index: {}]
  %s4 = inlined_call_operand.vmem [shape: f32[3,32,1], index: 4, kind: input, shape index: {}]
  %s5 = inlined_call_operand.vmem [shape: f32[3,32], index: 5, kind: input, shape index: {}]
  %s6 = inlined_call_operand.vmem [shape: f32[3,1], index: 6, kind: input, shape index: {}]
  %s7 = inlined_call_operand.hbm [shape: f32[3,512], index: 7, kind: output, shape index: {}]
  %s8 = sld [smem:[#allocation0]]
  $region61: #{tpu_custom_call.1} parent=0
    _
  %s10 = ssub.s32 1, %s8
  %s11 = scalar_select 0, %s10, %s8
  $region1: #{tpu_custom_call.1} parent=0
    #allocation2 [shape = 'u8[8192]{0}', space=vmem, size = 0x2000, scoped, tag = 'output window, operand 0']
    #allocation3 [shape = 's32[2]{0}', space=sflag, size = 0x8, scoped, tag = 'scoped memory for tpu_custom_call.1']
    %12 = vsyncpa [#allocation3], 0
    %s13 = scalar_lea.sflag [#allocation3], 1
    %14 = vsyncpa %s13, 0
    loop: start=0, step=1, limit=4
    $region2: #{tpu_custom_call.1} parent=1 // loop_pre_header
      _
    $region3: #{tpu_custom_call.1} parent=1 // loop_header
      %s16 = sphi 0, %s20
      %p17 = scmp.ge.s32.totalorder %s16, 4
      %s26 = sphi 0, %s28
      %s29 = sphi 0, %s26
      %s30 = sphi 0, %s29
      %s46 = sphi 0, %s30
      %s50 = sphi 0, %s50
      %s52 = sphi 0, %s50
      %s53 = sphi 0, %s52
      %s67 = sphi 0, %s53
      %s71 = sphi 0, %s71
      %s73 = sphi 0, %s71
      %s74 = sphi 0, %s73
      %s88 = sphi 0, %s74
      %s92 = sphi 0, %s92
      %s94 = sphi 0, %s92
      %s95 = sphi 0, %s94
      %s109 = sphi 0, %s95
      %s113 = sphi 0, %s113
      %s115 = sphi 0, %s113
      %s116 = sphi 0, %s115
      %s130 = sphi 0, %s116
      %s134 = sphi 0, %s134
      %s136 = sphi 0, %s134
      %s137 = sphi 0, %s136
      %s151 = sphi 0, %s137
      %s155 = sphi 0, %s155
      %s157 = sphi 0, %s155
      %s158 = sphi 0, %s157
      %s172 = sphi 0, %s158
      %s178 = sphi 0, %s180
      %s181 = sphi 0, %s178
      %s182 = sphi 0, %s181
      %s198 = sphi 0, %s182
    $region4: #{tpu_custom_call.1} parent=1 // loop_header_branch
      %19 = sbr.rel (%p17) target = $region8
    $region5: #{tpu_custom_call.1} parent=1 // loop_body
      %s21 = ssub.s32 %s16, 1
      %s22 = ssub.s32 %s16, 2
      %s23 = sadd.s32 %s16, 1
      %s24 = ssub.s32 %s16, %s23
      %p25 = scmp.eq.s32.totalorder %s24, 0
      %s27 = sadd.s32 %s26, 1
      %s28 = scalar_select %p25, %s26, %s27
      %p31 = pneg %p25
      %p32 = scmp.eq.s32.totalorder %s16, 1
      %p33 = por %p31, %p32
      %p34 = scmp.ne.s32.totalorder %s26, %s29
      %p35 = scmp.eq.s32.totalorder %s16, 0
      %p36 = por %p34, %p35
      %p37 = scmp.ne.s32.totalorder %s26, %s29
      %p38 = scmp.eq.s32.totalorder %s21, 1
      %p39 = por %p37, %p38
      %p40 = scmp.ne.s32.totalorder %s29, %s30
      %p41 = scmp.eq.s32.totalorder %s21, 0
      %p42 = por %p40, %p41
      %p43 = scmp.ne.s32.totalorder %s29, %s30
      %p44 = scmp.eq.s32.totalorder %s22, 1
      %p45 = por %p43, %p44
      %p47 = scmp.ne.s32.totalorder %s30, %s46
      %p48 = scmp.eq.s32.totalorder %s22, 0
      %p49 = por %p47, %p48
      %s51 = sadd.s32 %s50, 1
      %p54 = scmp.eq.s32.totalorder %s16, 1
      %p55 = scmp.ne.s32.totalorder %s50, %s52
      %p56 = scmp.eq.s32.totalorder %s16, 0
      %p57 = por %p55, %p56
      %p58 = scmp.ne.s32.totalorder %s50, %s52
      %p59 = scmp.eq.s32.totalorder %s21, 1
      %p60 = por %p58, %p59
      %p61 = scmp.ne.s32.totalorder %s52, %s53
      %p62 = scmp.eq.s32.totalorder %s21, 0
      %p63 = por %p61, %p62
      %p64 = scmp.ne.s32.totalorder %s52, %s53
      %p65 = scmp.eq.s32.totalorder %s22, 1
      %p66 = por %p64, %p65
      %p68 = scmp.ne.s32.totalorder %s53, %s67
      %p69 = scmp.eq.s32.totalorder %s22, 0
      %p70 = por %p68, %p69
      %s72 = sadd.s32 %s71, 1
      %p75 = scmp.eq.s32.totalorder %s16, 1
      %p76 = scmp.ne.s32.totalorder %s71, %s73
      %p77 = scmp.eq.s32.totalorder %s16, 0
      %p78 = por %p76, %p77
      %p79 = scmp.ne.s32.totalorder %s71, %s73
      %p80 = scmp.eq.s32.totalorder %s21, 1
      %p81 = por %p79, %p80
      %p82 = scmp.ne.s32.totalorder %s73, %s74
      %p83 = scmp.eq.s32.totalorder %s21, 0
      %p84 = por %p82, %p83
      %p85 = scmp.ne.s32.totalorder %s73, %s74
      %p86 = scmp.eq.s32.totalorder %s22, 1
      %p87 = por %p85, %p86
      %p89 = scmp.ne.s32.totalorder %s74, %s88
      %p90 = scmp.eq.s32.totalorder %s22, 0
      %p91 = por %p89, %p90
      %s93 = sadd.s32 %s92, 1
      %p96 = scmp.eq.s32.totalorder %s16, 1
      %p97 = scmp.ne.s32.totalorder %s92, %s94
      %p98 = scmp.eq.s32.totalorder %s16, 0
      %p99 = por %p97, %p98
      %p100 = scmp.ne.s32.totalorder %s92, %s94
      %p101 = scmp.eq.s32.totalorder %s21, 1
      %p102 = por %p100, %p101
      %p103 = scmp.ne.s32.totalorder %s94, %s95
      %p104 = scmp.eq.s32.totalorder %s21, 0
      %p105 = por %p103, %p104
      %p106 = scmp.ne.s32.totalorder %s94, %s95
      %p107 = scmp.eq.s32.totalorder %s22, 1
      %p108 = por %p106, %p107
      %p110 = scmp.ne.s32.totalorder %s95, %s109
      %p111 = scmp.eq.s32.totalorder %s22, 0
      %p112 = por %p110, %p111
      %s114 = sadd.s32 %s113, 1
      %p117 = scmp.eq.s32.totalorder %s16, 1
      %p118 = scmp.ne.s32.totalorder %s113, %s115
      %p119 = scmp.eq.s32.totalorder %s16, 0
      %p120 = por %p118, %p119
      %p121 = scmp.ne.s32.totalorder %s113, %s115
      %p122 = scmp.eq.s32.totalorder %s21, 1
      %p123 = por %p121, %p122
      %p124 = scmp.ne.s32.totalorder %s115, %s116
      %p125 = scmp.eq.s32.totalorder %s21, 0
      %p126 = por %p124, %p125
      %p127 = scmp.ne.s32.totalorder %s115, %s116
      %p128 = scmp.eq.s32.totalorder %s22, 1
      %p129 = por %p127, %p128
      %p131 = scmp.ne.s32.totalorder %s116, %s130
      %p132 = scmp.eq.s32.totalorder %s22, 0
      %p133 = por %p131, %p132
      %s135 = sadd.s32 %s134, 1
      %p138 = scmp.eq.s32.totalorder %s16, 1
      %p139 = scmp.ne.s32.totalorder %s134, %s136
      %p140 = scmp.eq.s32.totalorder %s16, 0
      %p141 = por %p139, %p140
      %p142 = scmp.ne.s32.totalorder %s134, %s136
      %p143 = scmp.eq.s32.totalorder %s21, 1
      %p144 = por %p142, %p143
      %p145 = scmp.ne.s32.totalorder %s136, %s137
      %p146 = scmp.eq.s32.totalorder %s21, 0
      %p147 = por %p145, %p146
      %p148 = scmp.ne.s32.totalorder %s136, %s137
      %p149 = scmp.eq.s32.totalorder %s22, 1
      %p150 = por %p148, %p149
      %p152 = scmp.ne.s32.totalorder %s137, %s151
      %p153 = scmp.eq.s32.totalorder %s22, 0
      %p154 = por %p152, %p153
      %s156 = sadd.s32 %s155, 1
      %p159 = scmp.eq.s32.totalorder %s16, 1
      %p160 = scmp.ne.s32.totalorder %s155, %s157
      %p161 = scmp.eq.s32.totalorder %s16, 0
      %p162 = por %p160, %p161
      %p163 = scmp.ne.s32.totalorder %s155, %s157
      %p164 = scmp.eq.s32.totalorder %s21, 1
      %p165 = por %p163, %p164
      %p166 = scmp.ne.s32.totalorder %s157, %s158
      %p167 = scmp.eq.s32.totalorder %s21, 0
      %p168 = por %p166, %p167
      %p169 = scmp.ne.s32.totalorder %s157, %s158
      %p170 = scmp.eq.s32.totalorder %s22, 1
      %p171 = por %p169, %p170
      %p173 = scmp.ne.s32.totalorder %s158, %s172
      %p174 = scmp.eq.s32.totalorder %s22, 0
      %p175 = por %p173, %p174
      %s176 = ssub.s32 %s16, %s23
      %p177 = scmp.eq.s32.totalorder %s176, 0
      %s179 = sadd.s32 %s178, 1
      %s180 = scalar_select %p177, %s178, %s179
      %p183 = pneg %p177
      %p184 = scmp.eq.s32.totalorder %s16, 1
      %p185 = por %p183, %p184
      %p186 = scmp.ne.s32.totalorder %s178, %s181
      %p187 = scmp.eq.s32.totalorder %s16, 0
      %p188 = por %p186, %p187
      %p189 = scmp.ne.s32.totalorder %s178, %s181
      %p190 = scmp.eq.s32.totalorder %s21, 1
      %p191 = por %p189, %p190
      %p192 = scmp.ne.s32.totalorder %s181, %s182
      %p193 = scmp.eq.s32.totalorder %s21, 0
      %p194 = por %p192, %p193
      %p195 = scmp.ne.s32.totalorder %s181, %s182
      %p196 = scmp.eq.s32.totalorder %s22, 1
      %p197 = por %p195, %p196
      %p199 = scmp.ne.s32.totalorder %s182, %s198
      %p200 = scmp.eq.s32.totalorder %s22, 0
      %p201 = por %p199, %p200
      %p202 = scmp.le.s32.totalorder 1, %s16
      %p203 = scmp.lt.s32.totalorder %s16, 3
      %p204 = pnand %p202, %p203
      %p205 = pneg %p204
      // Predicated region
      $region9: #{tpu_custom_call.1} parent=5 // pred_check
        _
      $region10: #{tpu_custom_call.1} parent=5 // pred_check_branch
        %207 = sbr.rel (%p204) target = $region12
      $region11: #{tpu_custom_call.1} parent=5 // pred_region
        %s208 = ssub.s32 %s16, 1
        // Predicated region
        $region13: #{tpu_custom_call.1} parent=11 // pred_check
          %p209 = pneg %p63
        $region14: #{tpu_custom_call.1} parent=11 // pred_check_branch
          %211 = sbr.rel (%p209) target = $region16
        $region15: #{tpu_custom_call.1} parent=11 // pred_region
          _
        $region16: #{tpu_custom_call.1} parent=11 // pred_fallthru
          _
        // Predicated region
        $region17: #{tpu_custom_call.1} parent=11 // pred_check
          %p212 = pneg %p84
        $region18: #{tpu_custom_call.1} parent=11 // pred_check_branch
          %214 = sbr.rel (%p212) target = $region20
        $region19: #{tpu_custom_call.1} parent=11 // pred_region
          _
        $region20: #{tpu_custom_call.1} parent=11 // pred_fallthru
          _
        // Predicated region
        $region21: #{tpu_custom_call.1} parent=11 // pred_check
          %p215 = pneg %p105
        $region22: #{tpu_custom_call.1} parent=11 // pred_check_branch
          %217 = sbr.rel (%p215) target = $region24
        $region23: #{tpu_custom_call.1} parent=11 // pred_region
          _
        $region24: #{tpu_custom_call.1} parent=11 // pred_fallthru
          _
        // Predicated region
        $region25: #{tpu_custom_call.1} parent=11 // pred_check
          %p218 = pneg %p126
        $region26: #{tpu_custom_call.1} parent=11 // pred_check_branch
          %220 = sbr.rel (%p218) target = $region28
        $region27: #{tpu_custom_call.1} parent=11 // pred_region
          _
        $region28: #{tpu_custom_call.1} parent=11 // pred_fallthru
          _
        // Predicated region
        $region29: #{tpu_custom_call.1} parent=11 // pred_check
          %p221 = pneg %p147
        $region30: #{tpu_custom_call.1} parent=11 // pred_check_branch
          %223 = sbr.rel (%p221) target = $region32
        $region31: #{tpu_custom_call.1} parent=11 // pred_region
          _
        $region32: #{tpu_custom_call.1} parent=11 // pred_fallthru
          _
        // Predicated region
        $region33: #{tpu_custom_call.1} parent=11 // pred_check
          %p224 = pneg %p168
        $region34: #{tpu_custom_call.1} parent=11 // pred_check_branch
          %226 = sbr.rel (%p224) target = $region36
        $region35: #{tpu_custom_call.1} parent=11 // pred_region
          _
        $region36: #{tpu_custom_call.1} parent=11 // pred_fallthru
          _
      $region12: #{tpu_custom_call.1} parent=5 // pred_fallthru
        _
      %p227 = scmp.lt.s32.totalorder %s16, 2
      // Predicated region
      $region37: #{tpu_custom_call.1} parent=5 // pred_check
        %p228 = pneg %p227
      $region38: #{tpu_custom_call.1} parent=5 // pred_check_branch
        %230 = sbr.rel (%p228) target = $region40
      $region39: #{tpu_custom_call.1} parent=5 // pred_region
        // Predicated region
        $region41: #{tpu_custom_call.1} parent=39 // pred_check
          %p231 = pneg %p36
        $region42: #{tpu_custom_call.1} parent=39 // pred_check_branch
          %233 = sbr.rel (%p231) target = $region44
        $region43: #{tpu_custom_call.1} parent=39 // pred_region
          %s234 = smul.u32 2, %s16
          %p235 = scmp.lt.s32.totalorder %s234, 3
          %s236 = scalar_select %p235, %s234, 3
          %s237 = smul.addr %s236, 2
          %s238 = scalar_lea.vmem %s0, %s237
          %s239 = smul.u32 2, %s16
        $region44: #{tpu_custom_call.1} parent=39 // pred_fallthru
          _
      $region40: #{tpu_custom_call.1} parent=5 // pred_fallthru
        _
      %p240 = scmp.le.s32.totalorder 1, %s16
      %p241 = scmp.lt.s32.totalorder %s16, 3
      %p242 = pnand %p240, %p241
      %p243 = pneg %p242
      // Predicated region
      $region45: #{tpu_custom_call.1} parent=5 // pred_check
        _
      $region46: #{tpu_custom_call.1} parent=5 // pred_check_branch
        %245 = sbr.rel (%p242) target = $region48
      $region47: #{tpu_custom_call.1} parent=5 // pred_region
        %s246 = ssub.s32 %s16, 1
        %s247 = smul.u32 2, %s21
        %p248 = scmp.lt.s32.totalorder %s247, 3
        %s249 = scalar_select %p248, %s247, 3
        %s250 = smul.addr %s249, 2
        %s251 = scalar_lea.vmem %s0, %s250
        %p252 = pneg %p42
        %p253 = pneg %p39
        %p254 = pneg %p63
        %p255 = pneg %p60
        %p256 = pneg %p84
        %p257 = pneg %p81
        %p258 = pneg %p105
        %p259 = pneg %p102
        %p260 = pneg %p126
        %p261 = pneg %p123
        %p262 = pneg %p147
        %p263 = pneg %p144
        %p264 = pneg %p168
        %p265 = pneg %p165
        %p266 = pneg %p194
        %p267 = pneg %p191
        %s268 = sand.u32 %s181, 1
        %s269 = scalar_lea.sflag [#allocation3], %s268
        %s270 = sand.u32 %s181, 1
        %s271 = smul.addr %s270, 8
        %s272 = scalar_lea.vmem [#allocation2], %s271
        %s273 = smul.u32 2, %s21
        %p274 = scmp.lt.s32.totalorder %s273, 3
        %s275 = scalar_select %p274, %s273, 3
        %s276 = smul.addr %s275, 2
        %s277 = scalar_lea.vmem %s0, %s276
        %s278 = smul.u32 2, %s21
        %s279 = smul.u32 2, %s21
        %v280 = vld [vmem:[%s277] sm:$0xf]
        %v281 = vand.u32 2147483647, %v280
        %vm282 = vcmp.le.f32.partialorder %v281, 0.7853982
        %vm283 = vcmp.lt.s32.totalorder %v280, 0
        %v284 = vand.u32 %v280, 2139095040
        %v285 = vshrl.u32 %v284, 23
        %v286 = vsub.s32 %v285, 127
        %v287 = vand.u32 2147483647, %v280
        %v288 = vand.u32 %v287, 8388607
        %v289 = vor.u32 %v288, 8388608
        %v290 = vsub.s32 0, %v289
        %v291 = vadd.s32 %v286, 1
        %vm292 = vcmp.gt.s32.totalorder %v291, 0
        %v293 = vsel %vm292, %v291, 0
        %v294 = vshrl.u32 %v293, 5
        %v295 = vand.u32 %v293, 31
        %v296 = vsub.s32 32, %v295
        %v297 = vshrl.u32 683565275, %v296
        %v298 = vshll.u32 683565275, %v295
        %v299 = vshrl.u32 2475754826, %v296
        %v300 = vor.u32 %v298, %v299
        %v301 = vshll.u32 2475754826, %v295
        %v302 = vshrl.u32 2131351028, %v296
        %v303 = vor.u32 %v301, %v302
        %v304 = vshll.u32 2131351028, %v295
        %v305 = vshrl.u32 2102212464, %v296
        %v306 = vor.u32 %v304, %v305
        %v307 = vshll.u32 2102212464, %v295
        %v308 = vshrl.u32 920167782, %v296
        %v309 = vor.u32 %v307, %v308
        %v310 = vshll.u32 920167782, %v295
        %v311 = vshrl.u32 1326507024, %v296
        %v312 = vor.u32 %v310, %v311
        %vm313 = vcmp.lt.s32.totalorder %v294, 1
        %vm314 = vcmp.lt.s32.totalorder %v294, 2
        %vm315 = vcmp.lt.s32.totalorder %v294, 3
        %vm316 = vcmp.lt.s32.totalorder %v294, 4
        %v317 = vsel %vm313, %v297, %v300
        %v318 = vsel %vm316, %v306, 2102212464
        %v319 = vsel %vm315, %v303, %v318
        %v320 = vsel %vm314, %v317, %v319
        %v321 = vsel %vm313, %v300, %v303
        %v322 = vsel %vm316, %v309, 920167782
        %v323 = vsel %vm315, %v306, %v322
        %v324 = vsel %vm314, %v321, %v323
        %v325 = vsel %vm313, %v303, %v306
        %v326 = vsel %vm316, %v312, 1326507024
        %v327 = vsel %vm315, %v309, %v326
        %v328 = vsel %vm314, %v325, %v327
        %v329 = vshll.u32 %v289, 8
        %v330 = vand.u32 %v329, 65535
        %v331 = vshrl.u32 %v329, 16
        %v332 = vand.u32 %v328, 65535
        %v333 = vshrl.u32 %v328, 16
        %v334 = vmul.u32 %v330, %v332
        %v335 = vmul.u32 %v330, %v333
        %v336 = vmul.u32 %v331, %v332
        %v337 = vmul.u32 %v331, %v333
        %v338 = vshll.u32 %v335, 16
        %v339 = vshrl.u32 %v335, 16
        %v340 = vshll.u32 %v336, 16
        %v341 = vshrl.u32 %v336, 16
        %vm342 = vc.u32 %v334, %v338
        %v343 = vsel %vm342, 1, 0
        %v344 = vadd.s32 %v334, %v338
        %v345 = vadd.s32 %v337, %v343
        %vm346 = vc.u32 %v344, %v340
        %v347 = vsel %vm346, 1, 0
        %v348 = vadd.s32 %v344, %v340
        %v349 = vadd.s32 %v345, %v347
        %v350 = vadd.s32 %v349, %v339
        %v351 = vadd.s32 %v350, %v341
        %v352 = vand.u32 %v329, 65535
        %v353 = vshrl.u32 %v329, 16
        %v354 = vand.u32 %v324, 65535
        %v355 = vshrl.u32 %v324, 16
        %v356 = vmul.u32 %v352, %v354
        %v357 = vmul.u32 %v352, %v355
        %v358 = vmul.u32 %v353, %v354
        %v359 = vmul.u32 %v353, %v355
        %v360 = vshll.u32 %v357, 16
        %v361 = vshrl.u32 %v357, 16
        %v362 = vshll.u32 %v358, 16
        %v363 = vshrl.u32 %v358, 16
        %vm364 = vc.u32 %v356, %v360
        %v365 = vsel %vm364, 1, 0
        %v366 = vadd.s32 %v356, %v360
        %v367 = vadd.s32 %v359, %v365
        %vm368 = vc.u32 %v366, %v362
        %v369 = vsel %vm368, 1, 0
        %v370 = vadd.s32 %v366, %v362
        %v371 = vadd.s32 %v367, %v369
        %v372 = vadd.s32 %v371, %v361
        %v373 = vadd.s32 %v372, %v363
        %v374 = vmul.u32 %v329, %v320
        %v375 = vadd.s32 %v351, %v370
        %vm376 = vc.u32 %v351, %v370
        %v377 = vadd.s32 %v373, 1
        %v378 = vsel %vm376, %v377, %v373
        %v379 = vadd.s32 %v374, %v378
        %v380 = vadd.s32 %v379, 536870912
        %v381 = vshrl.u32 %v380, 30
        %v382 = vshll.u32 %v381, 30
        %v383 = vsub.s32 %v379, %v382
        %vm384 = vcmp.lt.s32.totalorder %v383, 0
        %v385 = vsub.s32 0, %v383
        %v386 = vsel %vm384, %v385, %v383
        %v387 = vclz %v386
        %v388 = vsub.s32 %v387, 2
        %vm389 = vcmp.gt.s32.totalorder 0, %v388
        %v390 = vsel %vm389, 0, %v388
        %v391 = vsub.s32 32, %v390
        %v392 = vshll.u32 %v383, %v390
        %v393 = vshrl.u32 %v375, %v391
        %v394 = vor.u32 %v392, %v393
        %v395 = vsub.s32 4294967266, %v390
        %v396 = vadd.s32 %v395, 127
        %v397 = vshll.u32 %v396, 23
        %v398 = vor.u32 4788187, %v397
        %v399 = vand.u32 2147483647, %v398
        %v401 = vcvt.s32.f32 %v394
        %v402 = vmul.f32 %v401, %v399
        %v403 = vxor.u32 %v402, 2147483648
        %v404 = vsel %vm283, %v403, %v402
        %v405 = vsub.s32 4, %v381
        %v406 = vsel %vm283, %v405, %v381
        %v407 = vsel %vm282, %v280, %v404
        %v408 = vsel %vm282, 0, %v406
        %v409 = vmul.f32 %v407, %v407
        %v410 = vmul.f32 %v409, -0.001358992
        %v411 = vadd.f32 %v410, 0.041655596
        %v412 = vmul.f32 %v409, %v411
        %v413 = vadd.f32 %v412, -0.4999988
        %v414 = vmul.f32 %v409, %v413
        %v415 = vadd.f32 1.0, %v414
        %v416 = vmul.f32 %v407, %v407
        %v417 = vmul.f32 %v416, -0.00019511016
        %v418 = vadd.f32 %v417, 0.008332121
        %v419 = vmul.f32 %v416, %v418
        %v420 = vadd.f32 %v419, -0.16666654
        %v421 = vmul.f32 %v416, %v420
        %v422 = vadd.f32 %v421, 1.0
        %v423 = vmul.f32 %v422, %v407
        %vm424 = vweird.f32 %v280
        %v425 = vadd.s32 %v408, 3
        %v426 = vand.u32 %v425, 3
        %vm427 = vcmp.lt.s32.totalorder %v426, 2
        %vm428 = vcmp.eq.s32.totalorder %v426, 0
        %v429 = vxor.u32 %v423, 2147483648
        %v430 = vsel %vm428, %v415, %v429
        %vm431 = vcmp.eq.s32.totalorder %v426, 2
        %v432 = vxor.u32 %v415, 2147483648
        %v433 = vsel %vm431, %v432, %v423
        %v434 = vsel %vm427, %v430, %v433
        %v435 = vsel %vm424, nan, %v434
        %v436 = vand.u32 2147483647, %v280
        %vm437 = vcmp.le.f32.partialorder %v436, 0.7853982
        %vm438 = vcmp.lt.s32.totalorder %v280, 0
        %v439 = vand.u32 %v280, 2139095040
        %v440 = vshrl.u32 %v439, 23
        %v441 = vsub.s32 %v440, 127
        %v442 = vand.u32 2147483647, %v280
        %v443 = vand.u32 %v442, 8388607
        %v444 = vor.u32 %v443, 8388608
        %v445 = vsub.s32 0, %v444
        %v446 = vadd.s32 %v441, 1
        %vm447 = vcmp.gt.s32.totalorder %v446, 0
        %v448 = vsel %vm447, %v446, 0
        %v449 = vshrl.u32 %v448, 5
        %v450 = vand.u32 %v448, 31
        %v451 = vsub.s32 32, %v450
        %v452 = vshrl.u32 683565275, %v451
        %v453 = vshll.u32 683565275, %v450
        %v454 = vshrl.u32 2475754826, %v451
        %v455 = vor.u32 %v453, %v454
        %v456 = vshll.u32 2475754826, %v450
        %v457 = vshrl.u32 2131351028, %v451
        %v458 = vor.u32 %v456, %v457
        %v459 = vshll.u32 2131351028, %v450
        %v460 = vshrl.u32 2102212464, %v451
        %v461 = vor.u32 %v459, %v460
        %v462 = vshll.u32 2102212464, %v450
        %v463 = vshrl.u32 920167782, %v451
        %v464 = vor.u32 %v462, %v463
        %v465 = vshll.u32 920167782, %v450
        %v466 = vshrl.u32 1326507024, %v451
        %v467 = vor.u32 %v465, %v466
        %vm468 = vcmp.lt.s32.totalorder %v449, 1
        %vm469 = vcmp.lt.s32.totalorder %v449, 2
        %vm470 = vcmp.lt.s32.totalorder %v449, 3
        %vm471 = vcmp.lt.s32.totalorder %v449, 4
        %v472 = vsel %vm468, %v452, %v455
        %v473 = vsel %vm471, %v461, 2102212464
        %v474 = vsel %vm470, %v458, %v473
        %v475 = vsel %vm469, %v472, %v474
        %v476 = vsel %vm468, %v455, %v458
        %v477 = vsel %vm471, %v464, 920167782
        %v478 = vsel %vm470, %v461, %v477
        %v479 = vsel %vm469, %v476, %v478
        %v480 = vsel %vm468, %v458, %v461
        %v481 = vsel %vm471, %v467, 1326507024
        %v482 = vsel %vm470, %v464, %v481
        %v483 = vsel %vm469, %v480, %v482
        %v484 = vshll.u32 %v444, 8
        %v485 = vand.u32 %v484, 65535
        %v486 = vshrl.u32 %v484, 16
        %v487 = vand.u32 %v483, 65535
        %v488 = vshrl.u32 %v483, 16
        %v489 = vmul.u32 %v485, %v487
        %v490 = vmul.u32 %v485, %v488
        %v491 = vmul.u32 %v486, %v487
        %v492 = vmul.u32 %v486, %v488
        %v493 = vshll.u32 %v490, 16
        %v494 = vshrl.u32 %v490, 16
        %v495 = vshll.u32 %v491, 16
        %v496 = vshrl.u32 %v491, 16
        %vm497 = vc.u32 %v489, %v493
        %v498 = vsel %vm497, 1, 0
        %v499 = vadd.s32 %v489, %v493
        %v500 = vadd.s32 %v492, %v498
        %vm501 = vc.u32 %v499, %v495
        %v502 = vsel %vm501, 1, 0
        %v503 = vadd.s32 %v499, %v495
        %v504 = vadd.s32 %v500, %v502
        %v505 = vadd.s32 %v504, %v494
        %v506 = vadd.s32 %v505, %v496
        %v507 = vand.u32 %v484, 65535
        %v508 = vshrl.u32 %v484, 16
        %v509 = vand.u32 %v479, 65535
        %v510 = vshrl.u32 %v479, 16
        %v511 = vmul.u32 %v507, %v509
        %v512 = vmul.u32 %v507, %v510
        %v513 = vmul.u32 %v508, %v509
        %v514 = vmul.u32 %v508, %v510
        %v515 = vshll.u32 %v512, 16
        %v516 = vshrl.u32 %v512, 16
        %v517 = vshll.u32 %v513, 16
        %v518 = vshrl.u32 %v513, 16
        %vm519 = vc.u32 %v511, %v515
        %v520 = vsel %vm519, 1, 0
        %v521 = vadd.s32 %v511, %v515
        %v522 = vadd.s32 %v514, %v520
        %vm523 = vc.u32 %v521, %v517
        %v524 = vsel %vm523, 1, 0
        %v525 = vadd.s32 %v521, %v517
        %v526 = vadd.s32 %v522, %v524
        %v527 = vadd.s32 %v526, %v516
        %v528 = vadd.s32 %v527, %v518
        %v529 = vmul.u32 %v484, %v475
        %v530 = vadd.s32 %v506, %v525
        %vm531 = vc.u32 %v506, %v525
        %v532 = vadd.s32 %v528, 1
        %v533 = vsel %vm531, %v532, %v528
        %v534 = vadd.s32 %v529, %v533
        %v535 = vadd.s32 %v534, 536870912
        %v536 = vshrl.u32 %v535, 30
        %v537 = vshll.u32 %v536, 30
        %v538 = vsub.s32 %v534, %v537
        %vm539 = vcmp.lt.s32.totalorder %v538, 0
        %v540 = vsub.s32 0, %v538
        %v541 = vsel %vm539, %v540, %v538
        %v542 = vclz %v541
        %v543 = vsub.s32 %v542, 2
        %vm544 = vcmp.gt.s32.totalorder 0, %v543
        %v545 = vsel %vm544, 0, %v543
        %v546 = vsub.s32 32, %v545
        %v547 = vshll.u32 %v538, %v545
        %v548 = vshrl.u32 %v530, %v546
        %v549 = vor.u32 %v547, %v548
        %v550 = vsub.s32 4294967266, %v545
        %v551 = vadd.s32 %v550, 127
        %v552 = vshll.u32 %v551, 23
        %v553 = vor.u32 4788187, %v552
        %v554 = vand.u32 2147483647, %v553
        %v556 = vcvt.s32.f32 %v549
        %v557 = vmul.f32 %v556, %v554
        %v558 = vxor.u32 %v557, 2147483648
        %v559 = vsel %vm438, %v558, %v557
        %v560 = vsub.s32 4, %v536
        %v561 = vsel %vm438, %v560, %v536
        %v562 = vsel %vm437, %v280, %v559
        %v563 = vsel %vm437, 0, %v561
        %v564 = vmul.f32 %v562, %v562
        %v565 = vmul.f32 %v564, -0.001358992
        %v566 = vadd.f32 %v565, 0.041655596
        %v567 = vmul.f32 %v564, %v566
        %v568 = vadd.f32 %v567, -0.4999988
        %v569 = vmul.f32 %v564, %v568
        %v570 = vadd.f32 1.0, %v569
        %v571 = vmul.f32 %v562, %v562
        %v572 = vmul.f32 %v571, -0.00019511016
        %v573 = vadd.f32 %v572, 0.008332121
        %v574 = vmul.f32 %v571, %v573
        %v575 = vadd.f32 %v574, -0.16666654
        %v576 = vmul.f32 %v571, %v575
        %v577 = vadd.f32 %v576, 1.0
        %v578 = vmul.f32 %v577, %v562
        %vm579 = vweird.f32 %v280
        %v580 = vand.u32 %v563, 3
        %vm581 = vcmp.lt.s32.totalorder %v580, 2
        %vm582 = vcmp.eq.s32.totalorder %v580, 0
        %v583 = vxor.u32 %v578, 2147483648
        %v584 = vsel %vm582, %v570, %v583
        %vm585 = vcmp.eq.s32.totalorder %v580, 2
        %v586 = vxor.u32 %v570, 2147483648
        %v587 = vsel %vm585, %v586, %v578
        %v588 = vsel %vm581, %v584, %v587
        %v589 = vsel %vm579, nan, %v588
        %v590 = vmul.f32 %v280, 2.0
        %v591 = vand.u32 2147483647, %v590
        %vm592 = vcmp.le.f32.partialorder %v591, 0.7853982
        %vm593 = vcmp.lt.s32.totalorder %v590, 0
        %v594 = vand.u32 %v590, 2139095040
        %v595 = vshrl.u32 %v594, 23
        %v596 = vsub.s32 %v595, 127
        %v597 = vand.u32 2147483647, %v590
        %v598 = vand.u32 %v597, 8388607
        %v599 = vor.u32 %v598, 8388608
        %v600 = vsub.s32 0, %v599
        %v601 = vadd.s32 %v596, 1
        %vm602 = vcmp.gt.s32.totalorder %v601, 0
        %v603 = vsel %vm602, %v601, 0
        %v604 = vshrl.u32 %v603, 5
        %v605 = vand.u32 %v603, 31
        %v606 = vsub.s32 32, %v605
        %v607 = vshrl.u32 683565275, %v606
        %v608 = vshll.u32 683565275, %v605
        %v609 = vshrl.u32 2475754826, %v606
        %v610 = vor.u32 %v608, %v609
        %v611 = vshll.u32 2475754826, %v605
        %v612 = vshrl.u32 2131351028, %v606
        %v613 = vor.u32 %v611, %v612
        %v614 = vshll.u32 2131351028, %v605
        %v615 = vshrl.u32 2102212464, %v606
        %v616 = vor.u32 %v614, %v615
        %v617 = vshll.u32 2102212464, %v605
        %v618 = vshrl.u32 920167782, %v606
        %v619 = vor.u32 %v617, %v618
        %v620 = vshll.u32 920167782, %v605
        %v621 = vshrl.u32 1326507024, %v606
        %v622 = vor.u32 %v620, %v621
        %vm623 = vcmp.lt.s32.totalorder %v604, 1
        %vm624 = vcmp.lt.s32.totalorder %v604, 2
        %vm625 = vcmp.lt.s32.totalorder %v604, 3
        %vm626 = vcmp.lt.s32.totalorder %v604, 4
        %v627 = vsel %vm623, %v607, %v610
        %v628 = vsel %vm626, %v616, 2102212464
        %v629 = vsel %vm625, %v613, %v628
        %v630 = vsel %vm624, %v627, %v629
        %v631 = vsel %vm623, %v610, %v613
        %v632 = vsel %vm626, %v619, 920167782
        %v633 = vsel %vm625, %v616, %v632
        %v634 = vsel %vm624, %v631, %v633
        %v635 = vsel %vm623, %v613, %v616
        %v636 = vsel %vm626, %v622, 1326507024
        %v637 = vsel %vm625, %v619, %v636
        %v638 = vsel %vm624, %v635, %v637
        %v639 = vshll.u32 %v599, 8
        %v640 = vand.u32 %v639, 65535
        %v641 = vshrl.u32 %v639, 16
        %v642 = vand.u32 %v638, 65535
        %v643 = vshrl.u32 %v638, 16
        %v644 = vmul.u32 %v640, %v642
        %v645 = vmul.u32 %v640, %v643
        %v646 = vmul.u32 %v641, %v642
        %v647 = vmul.u32 %v641, %v643
        %v648 = vshll.u32 %v645, 16
        %v649 = vshrl.u32 %v645, 16
        %v650 = vshll.u32 %v646, 16
        %v651 = vshrl.u32 %v646, 16
        %vm652 = vc.u32 %v644, %v648
        %v653 = vsel %vm652, 1, 0
        %v654 = vadd.s32 %v644, %v648
        %v655 = vadd.s32 %v647, %v653
        %vm656 = vc.u32 %v654, %v650
        %v657 = vsel %vm656, 1, 0
        %v658 = vadd.s32 %v654, %v650
        %v659 = vadd.s32 %v655, %v657
        %v660 = vadd.s32 %v659, %v649
        %v661 = vadd.s32 %v660, %v651
        %v662 = vand.u32 %v639, 65535
        %v663 = vshrl.u32 %v639, 16
        %v664 = vand.u32 %v634, 65535
        %v665 = vshrl.u32 %v634, 16
        %v666 = vmul.u32 %v662, %v664
        %v667 = vmul.u32 %v662, %v665
        %v668 = vmul.u32 %v663, %v664
        %v669 = vmul.u32 %v663, %v665
        %v670 = vshll.u32 %v667, 16
        %v671 = vshrl.u32 %v667, 16
        %v672 = vshll.u32 %v668, 16
        %v673 = vshrl.u32 %v668, 16
        %vm674 = vc.u32 %v666, %v670
        %v675 = vsel %vm674, 1, 0
        %v676 = vadd.s32 %v666, %v670
        %v677 = vadd.s32 %v669, %v675
        %vm678 = vc.u32 %v676, %v672
        %v679 = vsel %vm678, 1, 0
        %v680 = vadd.s32 %v676, %v672
        %v681 = vadd.s32 %v677, %v679
        %v682 = vadd.s32 %v681, %v671
        %v683 = vadd.s32 %v682, %v673
        %v684 = vmul.u32 %v639, %v630
        %v685 = vadd.s32 %v661, %v680
        %vm686 = vc.u32 %v661, %v680
        %v687 = vadd.s32 %v683, 1
        %v688 = vsel %vm686, %v687, %v683
        %v689 = vadd.s32 %v684, %v688
        %v690 = vadd.s32 %v689, 536870912
        %v691 = vshrl.u32 %v690, 30
        %v692 = vshll.u32 %v691, 30
        %v693 = vsub.s32 %v689, %v692
        %vm694 = vcmp.lt.s32.totalorder %v693, 0
        %v695 = vsub.s32 0, %v693
        %v696 = vsel %vm694, %v695, %v693
        %v697 = vclz %v696
        %v698 = vsub.s32 %v697, 2
        %vm699 = vcmp.gt.s32.totalorder 0, %v698
        %v700 = vsel %vm699, 0, %v698
        %v701 = vsub.s32 32, %v700
        %v702 = vshll.u32 %v693, %v700
        %v703 = vshrl.u32 %v685, %v701
        %v704 = vor.u32 %v702, %v703
        %v705 = vsub.s32 4294967266, %v700
        %v706 = vadd.s32 %v705, 127
        %v707 = vshll.u32 %v706, 23
        %v708 = vor.u32 4788187, %v707
        %v709 = vand.u32 2147483647, %v708
        %v711 = vcvt.s32.f32 %v704
        %v712 = vmul.f32 %v711, %v709
        %v713 = vxor.u32 %v712, 2147483648
        %v714 = vsel %vm593, %v713, %v712
        %v715 = vsub.s32 4, %v691
        %v716 = vsel %vm593, %v715, %v691
        %v717 = vsel %vm592, %v590, %v714
        %v718 = vsel %vm592, 0, %v716
        %v719 = vmul.f32 %v717, %v717
        %v720 = vmul.f32 %v719, -0.001358992
        %v721 = vadd.f32 %v720, 0.041655596
        %v722 = vmul.f32 %v719, %v721
        %v723 = vadd.f32 %v722, -0.4999988
        %v724 = vmul.f32 %v719, %v723
        %v725 = vadd.f32 1.0, %v724
        %v726 = vmul.f32 %v717, %v717
        %v727 = vmul.f32 %v726, -0.00019511016
        %v728 = vadd.f32 %v727, 0.008332121
        %v729 = vmul.f32 %v726, %v728
        %v730 = vadd.f32 %v729, -0.16666654
        %v731 = vmul.f32 %v726, %v730
        %v732 = vadd.f32 %v731, 1.0
        %v733 = vmul.f32 %v732, %v717
        %vm734 = vweird.f32 %v590
        %v735 = vadd.s32 %v718, 3
        %v736 = vand.u32 %v735, 3
        %vm737 = vcmp.lt.s32.totalorder %v736, 2
        %vm738 = vcmp.eq.s32.totalorder %v736, 0
        %v739 = vxor.u32 %v733, 2147483648
        %v740 = vsel %vm738, %v725, %v739
        %vm741 = vcmp.eq.s32.totalorder %v736, 2
        %v742 = vxor.u32 %v725, 2147483648
        %v743 = vsel %vm741, %v742, %v733
        %v744 = vsel %vm737, %v740, %v743
        %v745 = vsel %vm734, nan, %v744
        %v746 = vand.u32 2147483647, %v590
        %vm747 = vcmp.le.f32.partialorder %v746, 0.7853982
        %vm748 = vcmp.lt.s32.totalorder %v590, 0
        %v749 = vand.u32 %v590, 2139095040
        %v750 = vshrl.u32 %v749, 23
        %v751 = vsub.s32 %v750, 127
        %v752 = vand.u32 2147483647, %v590
        %v753 = vand.u32 %v752, 8388607
        %v754 = vor.u32 %v753, 8388608
        %v755 = vsub.s32 0, %v754
        %v756 = vadd.s32 %v751, 1
        %vm757 = vcmp.gt.s32.totalorder %v756, 0
        %v758 = vsel %vm757, %v756, 0
        %v759 = vshrl.u32 %v758, 5
        %v760 = vand.u32 %v758, 31
        %v761 = vsub.s32 32, %v760
        %v762 = vshrl.u32 683565275, %v761
        %v763 = vshll.u32 683565275, %v760
        %v764 = vshrl.u32 2475754826, %v761
        %v765 = vor.u32 %v763, %v764
        %v766 = vshll.u32 2475754826, %v760
        %v767 = vshrl.u32 2131351028, %v761
        %v768 = vor.u32 %v766, %v767
        %v769 = vshll.u32 2131351028, %v760
        %v770 = vshrl.u32 2102212464, %v761
        %v771 = vor.u32 %v769, %v770
        %v772 = vshll.u32 2102212464, %v760
        %v773 = vshrl.u32 920167782, %v761
        %v774 = vor.u32 %v772, %v773
        %v775 = vshll.u32 920167782, %v760
        %v776 = vshrl.u32 1326507024, %v761
        %v777 = vor.u32 %v775, %v776
        %vm778 = vcmp.lt.s32.totalorder %v759, 1
        %vm779 = vcmp.lt.s32.totalorder %v759, 2
        %vm780 = vcmp.lt.s32.totalorder %v759, 3
        %vm781 = vcmp.lt.s32.totalorder %v759, 4
        %v782 = vsel %vm778, %v762, %v765
        %v783 = vsel %vm781, %v771, 2102212464
        %v784 = vsel %vm780, %v768, %v783
        %v785 = vsel %vm779, %v782, %v784
        %v786 = vsel %vm778, %v765, %v768
        %v787 = vsel %vm781, %v774, 920167782
        %v788 = vsel %vm780, %v771, %v787
        %v789 = vsel %vm779, %v786, %v788
        %v790 = vsel %vm778, %v768, %v771
        %v791 = vsel %vm781, %v777, 1326507024
        %v792 = vsel %vm780, %v774, %v791
        %v793 = vsel %vm779, %v790, %v792
        %v794 = vshll.u32 %v754, 8
        %v795 = vand.u32 %v794, 65535
        %v796 = vshrl.u32 %v794, 16
        %v797 = vand.u32 %v793, 65535
        %v798 = vshrl.u32 %v793, 16
        %v799 = vmul.u32 %v795, %v797
        %v800 = vmul.u32 %v795, %v798
        %v801 = vmul.u32 %v796, %v797
        %v802 = vmul.u32 %v796, %v798
        %v803 = vshll.u32 %v800, 16
        %v804 = vshrl.u32 %v800, 16
        %v805 = vshll.u32 %v801, 16
        %v806 = vshrl.u32 %v801, 16
        %vm807 = vc.u32 %v799, %v803
        %v808 = vsel %vm807, 1, 0
        %v809 = vadd.s32 %v799, %v803
        %v810 = vadd.s32 %v802, %v808
        %vm811 = vc.u32 %v809, %v805
        %v812 = vsel %vm811, 1, 0
        %v813 = vadd.s32 %v809, %v805
        %v814 = vadd.s32 %v810, %v812
        %v815 = vadd.s32 %v814, %v804
        %v816 = vadd.s32 %v815, %v806
        %v817 = vand.u32 %v794, 65535
        %v818 = vshrl.u32 %v794, 16
        %v819 = vand.u32 %v789, 65535
        %v820 = vshrl.u32 %v789, 16
        %v821 = vmul.u32 %v817, %v819
        %v822 = vmul.u32 %v817, %v820
        %v823 = vmul.u32 %v818, %v819
        %v824 = vmul.u32 %v818, %v820
        %v825 = vshll.u32 %v822, 16
        %v826 = vshrl.u32 %v822, 16
        %v827 = vshll.u32 %v823, 16
        %v828 = vshrl.u32 %v823, 16
        %vm829 = vc.u32 %v821, %v825
        %v830 = vsel %vm829, 1, 0
        %v831 = vadd.s32 %v821, %v825
        %v832 = vadd.s32 %v824, %v830
        %vm833 = vc.u32 %v831, %v827
        %v834 = vsel %vm833, 1, 0
        %v835 = vadd.s32 %v831, %v827
        %v836 = vadd.s32 %v832, %v834
        %v837 = vadd.s32 %v836, %v826
        %v838 = vadd.s32 %v837, %v828
        %v839 = vmul.u32 %v794, %v785
        %v840 = vadd.s32 %v816, %v835
        %vm841 = vc.u32 %v816, %v835
        %v842 = vadd.s32 %v838, 1
        %v843 = vsel %vm841, %v842, %v838
        %v844 = vadd.s32 %v839, %v843
        %v845 = vadd.s32 %v844, 536870912
        %v846 = vshrl.u32 %v845, 30
        %v847 = vshll.u32 %v846, 30
        %v848 = vsub.s32 %v844, %v847
        %vm849 = vcmp.lt.s32.totalorder %v848, 0
        %v850 = vsub.s32 0, %v848
        %v851 = vsel %vm849, %v850, %v848
        %v852 = vclz %v851
        %v853 = vsub.s32 %v852, 2
        %vm854 = vcmp.gt.s32.totalorder 0, %v853
        %v855 = vsel %vm854, 0, %v853
        %v856 = vsub.s32 32, %v855
        %v857 = vshll.u32 %v848, %v855
        %v858 = vshrl.u32 %v840, %v856
        %v859 = vor.u32 %v857, %v858
        %v860 = vsub.s32 4294967266, %v855
        %v861 = vadd.s32 %v860, 127
        %v862 = vshll.u32 %v861, 23
        %v863 = vor.u32 4788187, %v862
        %v864 = vand.u32 2147483647, %v863
        %v866 = vcvt.s32.f32 %v859
        %v867 = vmul.f32 %v866, %v864
        %v868 = vxor.u32 %v867, 2147483648
        %v869 = vsel %vm748, %v868, %v867
        %v870 = vsub.s32 4, %v846
        %v871 = vsel %vm748, %v870, %v846
        %v872 = vsel %vm747, %v590, %v869
        %v873 = vsel %vm747, 0, %v871
        %v874 = vmul.f32 %v872, %v872
        %v875 = vmul.f32 %v874, -0.001358992
        %v876 = vadd.f32 %v875, 0.041655596
        %v877 = vmul.f32 %v874, %v876
        %v878 = vadd.f32 %v877, -0.4999988
        %v879 = vmul.f32 %v874, %v878
        %v880 = vadd.f32 1.0, %v879
        %v881 = vmul.f32 %v872, %v872
        %v882 = vmul.f32 %v881, -0.00019511016
        %v883 = vadd.f32 %v882, 0.008332121
        %v884 = vmul.f32 %v881, %v883
        %v885 = vadd.f32 %v884, -0.16666654
        %v886 = vmul.f32 %v881, %v885
        %v887 = vadd.f32 %v886, 1.0
        %v888 = vmul.f32 %v887, %v872
        %vm889 = vweird.f32 %v590
        %v890 = vand.u32 %v873, 3
        %vm891 = vcmp.lt.s32.totalorder %v890, 2
        %vm892 = vcmp.eq.s32.totalorder %v890, 0
        %v893 = vxor.u32 %v888, 2147483648
        %v894 = vsel %vm892, %v880, %v893
        %vm895 = vcmp.eq.s32.totalorder %v890, 2
        %v896 = vxor.u32 %v880, 2147483648
        %v897 = vsel %vm895, %v896, %v888
        %v898 = vsel %vm891, %v894, %v897
        %v899 = vsel %vm889, nan, %v898
        %v900 = vmul.f32 %v280, 4.0
        %v901 = vand.u32 2147483647, %v900
        %vm902 = vcmp.le.f32.partialorder %v901, 0.7853982
        %vm903 = vcmp.lt.s32.totalorder %v900, 0
        %v904 = vand.u32 %v900, 2139095040
        %v905 = vshrl.u32 %v904, 23
        %v906 = vsub.s32 %v905, 127
        %v907 = vand.u32 2147483647, %v900
        %v908 = vand.u32 %v907, 8388607
        %v909 = vor.u32 %v908, 8388608
        %v910 = vsub.s32 0, %v909
        %v911 = vadd.s32 %v906, 1
        %vm912 = vcmp.gt.s32.totalorder %v911, 0
        %v913 = vsel %vm912, %v911, 0
        %v914 = vshrl.u32 %v913, 5
        %v915 = vand.u32 %v913, 31
        %v916 = vsub.s32 32, %v915
        %v917 = vshrl.u32 683565275, %v916
        %v918 = vshll.u32 683565275, %v915
        %v919 = vshrl.u32 2475754826, %v916
        %v920 = vor.u32 %v918, %v919
        %v921 = vshll.u32 2475754826, %v915
        %v922 = vshrl.u32 2131351028, %v916
        %v923 = vor.u32 %v921, %v922
        %v924 = vshll.u32 2131351028, %v915
        %v925 = vshrl.u32 2102212464, %v916
        %v926 = vor.u32 %v924, %v925
        %v927 = vshll.u32 2102212464, %v915
        %v928 = vshrl.u32 920167782, %v916
        %v929 = vor.u32 %v927, %v928
        %v930 = vshll.u32 920167782, %v915
        %v931 = vshrl.u32 1326507024, %v916
        %v932 = vor.u32 %v930, %v931
        %vm933 = vcmp.lt.s32.totalorder %v914, 1
        %vm934 = vcmp.lt.s32.totalorder %v914, 2
        %vm935 = vcmp.lt.s32.totalorder %v914, 3
        %vm936 = vcmp.lt.s32.totalorder %v914, 4
        %v937 = vsel %vm933, %v917, %v920
        %v938 = vsel %vm936, %v926, 2102212464
        %v939 = vsel %vm935, %v923, %v938
        %v940 = vsel %vm934, %v937, %v939
        %v941 = vsel %vm933, %v920, %v923
        %v942 = vsel %vm936, %v929, 920167782
        %v943 = vsel %vm935, %v926, %v942
        %v944 = vsel %vm934, %v941, %v943
        %v945 = vsel %vm933, %v923, %v926
        %v946 = vsel %vm936, %v932, 1326507024
        %v947 = vsel %vm935, %v929, %v946
        %v948 = vsel %vm934, %v945, %v947
        %v949 = vshll.u32 %v909, 8
        %v950 = vand.u32 %v949, 65535
        %v951 = vshrl.u32 %v949, 16
        %v952 = vand.u32 %v948, 65535
        %v953 = vshrl.u32 %v948, 16
        %v954 = vmul.u32 %v950, %v952
        %v955 = vmul.u32 %v950, %v953
        %v956 = vmul.u32 %v951, %v952
        %v957 = vmul.u32 %v951, %v953
        %v958 = vshll.u32 %v955, 16
        %v959 = vshrl.u32 %v955, 16
        %v960 = vshll.u32 %v956, 16
        %v961 = vshrl.u32 %v956, 16
        %vm962 = vc.u32 %v954, %v958
        %v963 = vsel %vm962, 1, 0
        %v964 = vadd.s32 %v954, %v958
        %v965 = vadd.s32 %v957, %v963
        %vm966 = vc.u32 %v964, %v960
        %v967 = vsel %vm966, 1, 0
        %v968 = vadd.s32 %v964, %v960
        %v969 = vadd.s32 %v965, %v967
        %v970 = vadd.s32 %v969, %v959
        %v971 = vadd.s32 %v970, %v961
        %v972 = vand.u32 %v949, 65535
        %v973 = vshrl.u32 %v949, 16
        %v974 = vand.u32 %v944, 65535
        %v975 = vshrl.u32 %v944, 16
        %v976 = vmul.u32 %v972, %v974
        %v977 = vmul.u32 %v972, %v975
        %v978 = vmul.u32 %v973, %v974
        %v979 = vmul.u32 %v973, %v975
        %v980 = vshll.u32 %v977, 16
        %v981 = vshrl.u32 %v977, 16
        %v982 = vshll.u32 %v978, 16
        %v983 = vshrl.u32 %v978, 16
        %vm984 = vc.u32 %v976, %v980
        %v985 = vsel %vm984, 1, 0
        %v986 = vadd.s32 %v976, %v980
        %v987 = vadd.s32 %v979, %v985
        %vm988 = vc.u32 %v986, %v982
        %v989 = vsel %vm988, 1, 0
        %v990 = vadd.s32 %v986, %v982
        %v991 = vadd.s32 %v987, %v989
        %v992 = vadd.s32 %v991, %v981
        %v993 = vadd.s32 %v992, %v983
        %v994 = vmul.u32 %v949, %v940
        %v995 = vadd.s32 %v971, %v990
        %vm996 = vc.u32 %v971, %v990
        %v997 = vadd.s32 %v993, 1
        %v998 = vsel %vm996, %v997, %v993
        %v999 = vadd.s32 %v994, %v998
        %v1000 = vadd.s32 %v999, 536870912
        %v1001 = vshrl.u32 %v1000, 30
        %v1002 = vshll.u32 %v1001, 30
        %v1003 = vsub.s32 %v999, %v1002
        %vm1004 = vcmp.lt.s32.totalorder %v1003, 0
        %v1005 = vsub.s32 0, %v1003
        %v1006 = vsel %vm1004, %v1005, %v1003
        %v1007 = vclz %v1006
        %v1008 = vsub.s32 %v1007, 2
        %vm1009 = vcmp.gt.s32.totalorder 0, %v1008
        %v1010 = vsel %vm1009, 0, %v1008
        %v1011 = vsub.s32 32, %v1010
        %v1012 = vshll.u32 %v1003, %v1010
        %v1013 = vshrl.u32 %v995, %v1011
        %v1014 = vor.u32 %v1012, %v1013
        %v1015 = vsub.s32 4294967266, %v1010
        %v1016 = vadd.s32 %v1015, 127
        %v1017 = vshll.u32 %v1016, 23
        %v1018 = vor.u32 4788187, %v1017
        %v1019 = vand.u32 2147483647, %v1018
        %v1021 = vcvt.s32.f32 %v1014
        %v1022 = vmul.f32 %v1021, %v1019
        %v1023 = vxor.u32 %v1022, 2147483648
        %v1024 = vsel %vm903, %v1023, %v1022
        %v1025 = vsub.s32 4, %v1001
        %v1026 = vsel %vm903, %v1025, %v1001
        %v1027 = vsel %vm902, %v900, %v1024
        %v1028 = vsel %vm902, 0, %v1026
        %v1029 = vmul.f32 %v1027, %v1027
        %v1030 = vmul.f32 %v1029, -0.001358992
        %v1031 = vadd.f32 %v1030, 0.041655596
        %v1032 = vmul.f32 %v1029, %v1031
        %v1033 = vadd.f32 %v1032, -0.4999988
        %v1034 = vmul.f32 %v1029, %v1033
        %v1035 = vadd.f32 1.0, %v1034
        %v1036 = vmul.f32 %v1027, %v1027
        %v1037 = vmul.f32 %v1036, -0.00019511016
        %v1038 = vadd.f32 %v1037, 0.008332121
        %v1039 = vmul.f32 %v1036, %v1038
        %v1040 = vadd.f32 %v1039, -0.16666654
        %v1041 = vmul.f32 %v1036, %v1040
        %v1042 = vadd.f32 %v1041, 1.0
        %v1043 = vmul.f32 %v1042, %v1027
        %vm1044 = vweird.f32 %v900
        %v1045 = vadd.s32 %v1028, 3
        %v1046 = vand.u32 %v1045, 3
        %vm1047 = vcmp.lt.s32.totalorder %v1046, 2
        %vm1048 = vcmp.eq.s32.totalorder %v1046, 0
        %v1049 = vxor.u32 %v1043, 2147483648
        %v1050 = vsel %vm1048, %v1035, %v1049
        %vm1051 = vcmp.eq.s32.totalorder %v1046, 2
        %v1052 = vxor.u32 %v1035, 2147483648
        %v1053 = vsel %vm1051, %v1052, %v1043
        %v1054 = vsel %vm1047, %v1050, %v1053
        %v1055 = vsel %vm1044, nan, %v1054
        %v1056 = vand.u32 2147483647, %v900
        %vm1057 = vcmp.le.f32.partialorder %v1056, 0.7853982
        %vm1058 = vcmp.lt.s32.totalorder %v900, 0
        %v1059 = vand.u32 %v900, 2139095040
        %v1060 = vshrl.u32 %v1059, 23
        %v1061 = vsub.s32 %v1060, 127
        %v1062 = vand.u32 2147483647, %v900
        %v1063 = vand.u32 %v1062, 8388607
        %v1064 = vor.u32 %v1063, 8388608
        %v1065 = vsub.s32 0, %v1064
        %v1066 = vadd.s32 %v1061, 1
        %vm1067 = vcmp.gt.s32.totalorder %v1066, 0
        %v1068 = vsel %vm1067, %v1066, 0
        %v1069 = vshrl.u32 %v1068, 5
        %v1070 = vand.u32 %v1068, 31
        %v1071 = vsub.s32 32, %v1070
        %v1072 = vshrl.u32 683565275, %v1071
        %v1073 = vshll.u32 683565275, %v1070
        %v1074 = vshrl.u32 2475754826, %v1071
        %v1075 = vor.u32 %v1073, %v1074
        %v1076 = vshll.u32 2475754826, %v1070
        %v1077 = vshrl.u32 2131351028, %v1071
        %v1078 = vor.u32 %v1076, %v1077
        %v1079 = vshll.u32 2131351028, %v1070
        %v1080 = vshrl.u32 2102212464, %v1071
        %v1081 = vor.u32 %v1079, %v1080
        %v1082 = vshll.u32 2102212464, %v1070
        %v1083 = vshrl.u32 920167782, %v1071
        %v1084 = vor.u32 %v1082, %v1083
        %v1085 = vshll.u32 920167782, %v1070
        %v1086 = vshrl.u32 1326507024, %v1071
        %v1087 = vor.u32 %v1085, %v1086
        %vm1088 = vcmp.lt.s32.totalorder %v1069, 1
        %vm1089 = vcmp.lt.s32.totalorder %v1069, 2
        %vm1090 = vcmp.lt.s32.totalorder %v1069, 3
        %vm1091 = vcmp.lt.s32.totalorder %v1069, 4
        %v1092 = vsel %vm1088, %v1072, %v1075
        %v1093 = vsel %vm1091, %v1081, 2102212464
        %v1094 = vsel %vm1090, %v1078, %v1093
        %v1095 = vsel %vm1089, %v1092, %v1094
        %v1096 = vsel %vm1088, %v1075, %v1078
        %v1097 = vsel %vm1091, %v1084, 920167782
        %v1098 = vsel %vm1090, %v1081, %v1097
        %v1099 = vsel %vm1089, %v1096, %v1098
        %v1100 = vsel %vm1088, %v1078, %v1081
        %v1101 = vsel %vm1091, %v1087, 1326507024
        %v1102 = vsel %vm1090, %v1084, %v1101
        %v1103 = vsel %vm1089, %v1100, %v1102
        %v1104 = vshll.u32 %v1064, 8
        %v1105 = vand.u32 %v1104, 65535
        %v1106 = vshrl.u32 %v1104, 16
        %v1107 = vand.u32 %v1103, 65535
        %v1108 = vshrl.u32 %v1103, 16
        %v1109 = vmul.u32 %v1105, %v1107
        %v1110 = vmul.u32 %v1105, %v1108
        %v1111 = vmul.u32 %v1106, %v1107
        %v1112 = vmul.u32 %v1106, %v1108
        %v1113 = vshll.u32 %v1110, 16
        %v1114 = vshrl.u32 %v1110, 16
        %v1115 = vshll.u32 %v1111, 16
        %v1116 = vshrl.u32 %v1111, 16
        %vm1117 = vc.u32 %v1109, %v1113
        %v1118 = vsel %vm1117, 1, 0
        %v1119 = vadd.s32 %v1109, %v1113
        %v1120 = vadd.s32 %v1112, %v1118
        %vm1121 = vc.u32 %v1119, %v1115
        %v1122 = vsel %vm1121, 1, 0
        %v1123 = vadd.s32 %v1119, %v1115
        %v1124 = vadd.s32 %v1120, %v1122
        %v1125 = vadd.s32 %v1124, %v1114
        %v1126 = vadd.s32 %v1125, %v1116
        %v1127 = vand.u32 %v1104, 65535
        %v1128 = vshrl.u32 %v1104, 16
        %v1129 = vand.u32 %v1099, 65535
        %v1130 = vshrl.u32 %v1099, 16
        %v1131 = vmul.u32 %v1127, %v1129
        %v1132 = vmul.u32 %v1127, %v1130
        %v1133 = vmul.u32 %v1128, %v1129
        %v1134 = vmul.u32 %v1128, %v1130
        %v1135 = vshll.u32 %v1132, 16
        %v1136 = vshrl.u32 %v1132, 16
        %v1137 = vshll.u32 %v1133, 16
        %v1138 = vshrl.u32 %v1133, 16
        %vm1139 = vc.u32 %v1131, %v1135
        %v1140 = vsel %vm1139, 1, 0
        %v1141 = vadd.s32 %v1131, %v1135
        %v1142 = vadd.s32 %v1134, %v1140
        %vm1143 = vc.u32 %v1141, %v1137
        %v1144 = vsel %vm1143, 1, 0
        %v1145 = vadd.s32 %v1141, %v1137
        %v1146 = vadd.s32 %v1142, %v1144
        %v1147 = vadd.s32 %v1146, %v1136
        %v1148 = vadd.s32 %v1147, %v1138
        %v1149 = vmul.u32 %v1104, %v1095
        %v1150 = vadd.s32 %v1126, %v1145
        %vm1151 = vc.u32 %v1126, %v1145
        %v1152 = vadd.s32 %v1148, 1
        %v1153 = vsel %vm1151, %v1152, %v1148
        %v1154 = vadd.s32 %v1149, %v1153
        %v1155 = vadd.s32 %v1154, 536870912
        %v1156 = vshrl.u32 %v1155, 30
        %v1157 = vshll.u32 %v1156, 30
        %v1158 = vsub.s32 %v1154, %v1157
        %vm1159 = vcmp.lt.s32.totalorder %v1158, 0
        %v1160 = vsub.s32 0, %v1158
        %v1161 = vsel %vm1159, %v1160, %v1158
        %v1162 = vclz %v1161
        %v1163 = vsub.s32 %v1162, 2
        %vm1164 = vcmp.gt.s32.totalorder 0, %v1163
        %v1165 = vsel %vm1164, 0, %v1163
        %v1166 = vsub.s32 32, %v1165
        %v1167 = vshll.u32 %v1158, %v1165
        %v1168 = vshrl.u32 %v1150, %v1166
        %v1169 = vor.u32 %v1167, %v1168
        %v1170 = vsub.s32 4294967266, %v1165
        %v1171 = vadd.s32 %v1170, 127
        %v1172 = vshll.u32 %v1171, 23
        %v1173 = vor.u32 4788187, %v1172
        %v1174 = vand.u32 2147483647, %v1173
        %v1176 = vcvt.s32.f32 %v1169
        %v1177 = vmul.f32 %v1176, %v1174
        %v1178 = vxor.u32 %v1177, 2147483648
        %v1179 = vsel %vm1058, %v1178, %v1177
        %v1180 = vsub.s32 4, %v1156
        %v1181 = vsel %vm1058, %v1180, %v1156
        %v1182 = vsel %vm1057, %v900, %v1179
        %v1183 = vsel %vm1057, 0, %v1181
        %v1184 = vmul.f32 %v1182, %v1182
        %v1185 = vmul.f32 %v1184, -0.001358992
        %v1186 = vadd.f32 %v1185, 0.041655596
        %v1187 = vmul.f32 %v1184, %v1186
        %v1188 = vadd.f32 %v1187, -0.4999988
        %v1189 = vmul.f32 %v1184, %v1188
        %v1190 = vadd.f32 1.0, %v1189
        %v1191 = vmul.f32 %v1182, %v1182
        %v1192 = vmul.f32 %v1191, -0.00019511016
        %v1193 = vadd.f32 %v1192, 0.008332121
        %v1194 = vmul.f32 %v1191, %v1193
        %v1195 = vadd.f32 %v1194, -0.16666654
        %v1196 = vmul.f32 %v1191, %v1195
        %v1197 = vadd.f32 %v1196, 1.0
        %v1198 = vmul.f32 %v1197, %v1182
        %vm1199 = vweird.f32 %v900
        %v1200 = vand.u32 %v1183, 3
        %vm1201 = vcmp.lt.s32.totalorder %v1200, 2
        %vm1202 = vcmp.eq.s32.totalorder %v1200, 0
        %v1203 = vxor.u32 %v1198, 2147483648
        %v1204 = vsel %vm1202, %v1190, %v1203
        %vm1205 = vcmp.eq.s32.totalorder %v1200, 2
        %v1206 = vxor.u32 %v1190, 2147483648
        %v1207 = vsel %vm1205, %v1206, %v1198
        %v1208 = vsel %vm1201, %v1204, %v1207
        %v1209 = vsel %vm1199, nan, %v1208
        %v1210 = vmul.f32 %v280, 8.0
        %v1211 = vand.u32 2147483647, %v1210
        %vm1212 = vcmp.le.f32.partialorder %v1211, 0.7853982
        %vm1213 = vcmp.lt.s32.totalorder %v1210, 0
        %v1214 = vand.u32 %v1210, 2139095040
        %v1215 = vshrl.u32 %v1214, 23
        %v1216 = vsub.s32 %v1215, 127
        %v1217 = vand.u32 2147483647, %v1210
        %v1218 = vand.u32 %v1217, 8388607
        %v1219 = vor.u32 %v1218, 8388608
        %v1220 = vsub.s32 0, %v1219
        %v1221 = vadd.s32 %v1216, 1
        %vm1222 = vcmp.gt.s32.totalorder %v1221, 0
        %v1223 = vsel %vm1222, %v1221, 0
        %v1224 = vshrl.u32 %v1223, 5
        %v1225 = vand.u32 %v1223, 31
        %v1226 = vsub.s32 32, %v1225
        %v1227 = vshrl.u32 683565275, %v1226
        %v1228 = vshll.u32 683565275, %v1225
        %v1229 = vshrl.u32 2475754826, %v1226
        %v1230 = vor.u32 %v1228, %v1229
        %v1231 = vshll.u32 2475754826, %v1225
        %v1232 = vshrl.u32 2131351028, %v1226
        %v1233 = vor.u32 %v1231, %v1232
        %v1234 = vshll.u32 2131351028, %v1225
        %v1235 = vshrl.u32 2102212464, %v1226
        %v1236 = vor.u32 %v1234, %v1235
        %v1237 = vshll.u32 2102212464, %v1225
        %v1238 = vshrl.u32 920167782, %v1226
        %v1239 = vor.u32 %v1237, %v1238
        %v1240 = vshll.u32 920167782, %v1225
        %v1241 = vshrl.u32 1326507024, %v1226
        %v1242 = vor.u32 %v1240, %v1241
        %vm1243 = vcmp.lt.s32.totalorder %v1224, 1
        %vm1244 = vcmp.lt.s32.totalorder %v1224, 2
        %vm1245 = vcmp.lt.s32.totalorder %v1224, 3
        %vm1246 = vcmp.lt.s32.totalorder %v1224, 4
        %v1247 = vsel %vm1243, %v1227, %v1230
        %v1248 = vsel %vm1246, %v1236, 2102212464
        %v1249 = vsel %vm1245, %v1233, %v1248
        %v1250 = vsel %vm1244, %v1247, %v1249
        %v1251 = vsel %vm1243, %v1230, %v1233
        %v1252 = vsel %vm1246, %v1239, 920167782
        %v1253 = vsel %vm1245, %v1236, %v1252
        %v1254 = vsel %vm1244, %v1251, %v1253
        %v1255 = vsel %vm1243, %v1233, %v1236
        %v1256 = vsel %vm1246, %v1242, 1326507024
        %v1257 = vsel %vm1245, %v1239, %v1256
        %v1258 = vsel %vm1244, %v1255, %v1257
        %v1259 = vshll.u32 %v1219, 8
        %v1260 = vand.u32 %v1259, 65535
        %v1261 = vshrl.u32 %v1259, 16
        %v1262 = vand.u32 %v1258, 65535
        %v1263 = vshrl.u32 %v1258, 16
        %v1264 = vmul.u32 %v1260, %v1262
        %v1265 = vmul.u32 %v1260, %v1263
        %v1266 = vmul.u32 %v1261, %v1262
        %v1267 = vmul.u32 %v1261, %v1263
        %v1268 = vshll.u32 %v1265, 16
        %v1269 = vshrl.u32 %v1265, 16
        %v1270 = vshll.u32 %v1266, 16
        %v1271 = vshrl.u32 %v1266, 16
        %vm1272 = vc.u32 %v1264, %v1268
        %v1273 = vsel %vm1272, 1, 0
        %v1274 = vadd.s32 %v1264, %v1268
        %v1275 = vadd.s32 %v1267, %v1273
        %vm1276 = vc.u32 %v1274, %v1270
        %v1277 = vsel %vm1276, 1, 0
        %v1278 = vadd.s32 %v1274, %v1270
        %v1279 = vadd.s32 %v1275, %v1277
        %v1280 = vadd.s32 %v1279, %v1269
        %v1281 = vadd.s32 %v1280, %v1271
        %v1282 = vand.u32 %v1259, 65535
        %v1283 = vshrl.u32 %v1259, 16
        %v1284 = vand.u32 %v1254, 65535
        %v1285 = vshrl.u32 %v1254, 16
        %v1286 = vmul.u32 %v1282, %v1284
        %v1287 = vmul.u32 %v1282, %v1285
        %v1288 = vmul.u32 %v1283, %v1284
        %v1289 = vmul.u32 %v1283, %v1285
        %v1290 = vshll.u32 %v1287, 16
        %v1291 = vshrl.u32 %v1287, 16
        %v1292 = vshll.u32 %v1288, 16
        %v1293 = vshrl.u32 %v1288, 16
        %vm1294 = vc.u32 %v1286, %v1290
        %v1295 = vsel %vm1294, 1, 0
        %v1296 = vadd.s32 %v1286, %v1290
        %v1297 = vadd.s32 %v1289, %v1295
        %vm1298 = vc.u32 %v1296, %v1292
        %v1299 = vsel %vm1298, 1, 0
        %v1300 = vadd.s32 %v1296, %v1292
        %v1301 = vadd.s32 %v1297, %v1299
        %v1302 = vadd.s32 %v1301, %v1291
        %v1303 = vadd.s32 %v1302, %v1293
        %v1304 = vmul.u32 %v1259, %v1250
        %v1305 = vadd.s32 %v1281, %v1300
        %vm1306 = vc.u32 %v1281, %v1300
        %v1307 = vadd.s32 %v1303, 1
        %v1308 = vsel %vm1306, %v1307, %v1303
        %v1309 = vadd.s32 %v1304, %v1308
        %v1310 = vadd.s32 %v1309, 536870912
        %v1311 = vshrl.u32 %v1310, 30
        %v1312 = vshll.u32 %v1311, 30
        %v1313 = vsub.s32 %v1309, %v1312
        %vm1314 = vcmp.lt.s32.totalorder %v1313, 0
        %v1315 = vsub.s32 0, %v1313
        %v1316 = vsel %vm1314, %v1315, %v1313
        %v1317 = vclz %v1316
        %v1318 = vsub.s32 %v1317, 2
        %vm1319 = vcmp.gt.s32.totalorder 0, %v1318
        %v1320 = vsel %vm1319, 0, %v1318
        %v1321 = vsub.s32 32, %v1320
        %v1322 = vshll.u32 %v1313, %v1320
        %v1323 = vshrl.u32 %v1305, %v1321
        %v1324 = vor.u32 %v1322, %v1323
        %v1325 = vsub.s32 4294967266, %v1320
        %v1326 = vadd.s32 %v1325, 127
        %v1327 = vshll.u32 %v1326, 23
        %v1328 = vor.u32 4788187, %v1327
        %v1329 = vand.u32 2147483647, %v1328
        %v1331 = vcvt.s32.f32 %v1324
        %v1332 = vmul.f32 %v1331, %v1329
        %v1333 = vxor.u32 %v1332, 2147483648
        %v1334 = vsel %vm1213, %v1333, %v1332
        %v1335 = vsub.s32 4, %v1311
        %v1336 = vsel %vm1213, %v1335, %v1311
        %v1337 = vsel %vm1212, %v1210, %v1334
        %v1338 = vsel %vm1212, 0, %v1336
        %v1339 = vmul.f32 %v1337, %v1337
        %v1340 = vmul.f32 %v1339, -0.001358992
        %v1341 = vadd.f32 %v1340, 0.041655596
        %v1342 = vmul.f32 %v1339, %v1341
        %v1343 = vadd.f32 %v1342, -0.4999988
        %v1344 = vmul.f32 %v1339, %v1343
        %v1345 = vadd.f32 1.0, %v1344
        %v1346 = vmul.f32 %v1337, %v1337
        %v1347 = vmul.f32 %v1346, -0.00019511016
        %v1348 = vadd.f32 %v1347, 0.008332121
        %v1349 = vmul.f32 %v1346, %v1348
        %v1350 = vadd.f32 %v1349, -0.16666654
        %v1351 = vmul.f32 %v1346, %v1350
        %v1352 = vadd.f32 %v1351, 1.0
        %v1353 = vmul.f32 %v1352, %v1337
        %vm1354 = vweird.f32 %v1210
        %v1355 = vadd.s32 %v1338, 3
        %v1356 = vand.u32 %v1355, 3
        %vm1357 = vcmp.lt.s32.totalorder %v1356, 2
        %vm1358 = vcmp.eq.s32.totalorder %v1356, 0
        %v1359 = vxor.u32 %v1353, 2147483648
        %v1360 = vsel %vm1358, %v1345, %v1359
        %vm1361 = vcmp.eq.s32.totalorder %v1356, 2
        %v1362 = vxor.u32 %v1345, 2147483648
        %v1363 = vsel %vm1361, %v1362, %v1353
        %v1364 = vsel %vm1357, %v1360, %v1363
        %v1365 = vsel %vm1354, nan, %v1364
        %v1366 = vand.u32 2147483647, %v1210
        %vm1367 = vcmp.le.f32.partialorder %v1366, 0.7853982
        %vm1368 = vcmp.lt.s32.totalorder %v1210, 0
        %v1369 = vand.u32 %v1210, 2139095040
        %v1370 = vshrl.u32 %v1369, 23
        %v1371 = vsub.s32 %v1370, 127
        %v1372 = vand.u32 2147483647, %v1210
        %v1373 = vand.u32 %v1372, 8388607
        %v1374 = vor.u32 %v1373, 8388608
        %v1375 = vsub.s32 0, %v1374
        %v1376 = vadd.s32 %v1371, 1
        %vm1377 = vcmp.gt.s32.totalorder %v1376, 0
        %v1378 = vsel %vm1377, %v1376, 0
        %v1379 = vshrl.u32 %v1378, 5
        %v1380 = vand.u32 %v1378, 31
        %v1381 = vsub.s32 32, %v1380
        %v1382 = vshrl.u32 683565275, %v1381
        %v1383 = vshll.u32 683565275, %v1380
        %v1384 = vshrl.u32 2475754826, %v1381
        %v1385 = vor.u32 %v1383, %v1384
        %v1386 = vshll.u32 2475754826, %v1380
        %v1387 = vshrl.u32 2131351028, %v1381
        %v1388 = vor.u32 %v1386, %v1387
        %v1389 = vshll.u32 2131351028, %v1380
        %v1390 = vshrl.u32 2102212464, %v1381
        %v1391 = vor.u32 %v1389, %v1390
        %v1392 = vshll.u32 2102212464, %v1380
        %v1393 = vshrl.u32 920167782, %v1381
        %v1394 = vor.u32 %v1392, %v1393
        %v1395 = vshll.u32 920167782, %v1380
        %v1396 = vshrl.u32 1326507024, %v1381
        %v1397 = vor.u32 %v1395, %v1396
        %vm1398 = vcmp.lt.s32.totalorder %v1379, 1
        %vm1399 = vcmp.lt.s32.totalorder %v1379, 2
        %vm1400 = vcmp.lt.s32.totalorder %v1379, 3
        %vm1401 = vcmp.lt.s32.totalorder %v1379, 4
        %v1402 = vsel %vm1398, %v1382, %v1385
        %v1403 = vsel %vm1401, %v1391, 2102212464
        %v1404 = vsel %vm1400, %v1388, %v1403
        %v1405 = vsel %vm1399, %v1402, %v1404
        %v1406 = vsel %vm1398, %v1385, %v1388
        %v1407 = vsel %vm1401, %v1394, 920167782
        %v1408 = vsel %vm1400, %v1391, %v1407
        %v1409 = vsel %vm1399, %v1406, %v1408
        %v1410 = vsel %vm1398, %v1388, %v1391
        %v1411 = vsel %vm1401, %v1397, 1326507024
        %v1412 = vsel %vm1400, %v1394, %v1411
        %v1413 = vsel %vm1399, %v1410, %v1412
        %v1414 = vshll.u32 %v1374, 8
        %v1415 = vand.u32 %v1414, 65535
        %v1416 = vshrl.u32 %v1414, 16
        %v1417 = vand.u32 %v1413, 65535
        %v1418 = vshrl.u32 %v1413, 16
        %v1419 = vmul.u32 %v1415, %v1417
        %v1420 = vmul.u32 %v1415, %v1418
        %v1421 = vmul.u32 %v1416, %v1417
        %v1422 = vmul.u32 %v1416, %v1418
        %v1423 = vshll.u32 %v1420, 16
        %v1424 = vshrl.u32 %v1420, 16
        %v1425 = vshll.u32 %v1421, 16
        %v1426 = vshrl.u32 %v1421, 16
        %vm1427 = vc.u32 %v1419, %v1423
        %v1428 = vsel %vm1427, 1, 0
        %v1429 = vadd.s32 %v1419, %v1423
        %v1430 = vadd.s32 %v1422, %v1428
        %vm1431 = vc.u32 %v1429, %v1425
        %v1432 = vsel %vm1431, 1, 0
        %v1433 = vadd.s32 %v1429, %v1425
        %v1434 = vadd.s32 %v1430, %v1432
        %v1435 = vadd.s32 %v1434, %v1424
        %v1436 = vadd.s32 %v1435, %v1426
        %v1437 = vand.u32 %v1414, 65535
        %v1438 = vshrl.u32 %v1414, 16
        %v1439 = vand.u32 %v1409, 65535
        %v1440 = vshrl.u32 %v1409, 16
        %v1441 = vmul.u32 %v1437, %v1439
        %v1442 = vmul.u32 %v1437, %v1440
        %v1443 = vmul.u32 %v1438, %v1439
        %v1444 = vmul.u32 %v1438, %v1440
        %v1445 = vshll.u32 %v1442, 16
        %v1446 = vshrl.u32 %v1442, 16
        %v1447 = vshll.u32 %v1443, 16
        %v1448 = vshrl.u32 %v1443, 16
        %vm1449 = vc.u32 %v1441, %v1445
        %v1450 = vsel %vm1449, 1, 0
        %v1451 = vadd.s32 %v1441, %v1445
        %v1452 = vadd.s32 %v1444, %v1450
        %vm1453 = vc.u32 %v1451, %v1447
        %v1454 = vsel %vm1453, 1, 0
        %v1455 = vadd.s32 %v1451, %v1447
        %v1456 = vadd.s32 %v1452, %v1454
        %v1457 = vadd.s32 %v1456, %v1446
        %v1458 = vadd.s32 %v1457, %v1448
        %v1459 = vmul.u32 %v1414, %v1405
        %v1460 = vadd.s32 %v1436, %v1455
        %vm1461 = vc.u32 %v1436, %v1455
        %v1462 = vadd.s32 %v1458, 1
        %v1463 = vsel %vm1461, %v1462, %v1458
        %v1464 = vadd.s32 %v1459, %v1463
        %v1465 = vadd.s32 %v1464, 536870912
        %v1466 = vshrl.u32 %v1465, 30
        %v1467 = vshll.u32 %v1466, 30
        %v1468 = vsub.s32 %v1464, %v1467
        %vm1469 = vcmp.lt.s32.totalorder %v1468, 0
        %v1470 = vsub.s32 0, %v1468
        %v1471 = vsel %vm1469, %v1470, %v1468
        %v1472 = vclz %v1471
        %v1473 = vsub.s32 %v1472, 2
        %vm1474 = vcmp.gt.s32.totalorder 0, %v1473
        %v1475 = vsel %vm1474, 0, %v1473
        %v1476 = vsub.s32 32, %v1475
        %v1477 = vshll.u32 %v1468, %v1475
        %v1478 = vshrl.u32 %v1460, %v1476
        %v1479 = vor.u32 %v1477, %v1478
        %v1480 = vsub.s32 4294967266, %v1475
        %v1481 = vadd.s32 %v1480, 127
        %v1482 = vshll.u32 %v1481, 23
        %v1483 = vor.u32 4788187, %v1482
        %v1484 = vand.u32 2147483647, %v1483
        %v1486 = vcvt.s32.f32 %v1479
        %v1487 = vmul.f32 %v1486, %v1484
        %v1488 = vxor.u32 %v1487, 2147483648
        %v1489 = vsel %vm1368, %v1488, %v1487
        %v1490 = vsub.s32 4, %v1466
        %v1491 = vsel %vm1368, %v1490, %v1466
        %v1492 = vsel %vm1367, %v1210, %v1489
        %v1493 = vsel %vm1367, 0, %v1491
        %v1494 = vmul.f32 %v1492, %v1492
        %v1495 = vmul.f32 %v1494, -0.001358992
        %v1496 = vadd.f32 %v1495, 0.041655596
        %v1497 = vmul.f32 %v1494, %v1496
        %v1498 = vadd.f32 %v1497, -0.4999988
        %v1499 = vmul.f32 %v1494, %v1498
        %v1500 = vadd.f32 1.0, %v1499
        %v1501 = vmul.f32 %v1492, %v1492
        %v1502 = vmul.f32 %v1501, -0.00019511016
        %v1503 = vadd.f32 %v1502, 0.008332121
        %v1504 = vmul.f32 %v1501, %v1503
        %v1505 = vadd.f32 %v1504, -0.16666654
        %v1506 = vmul.f32 %v1501, %v1505
        %v1507 = vadd.f32 %v1506, 1.0
        %v1508 = vmul.f32 %v1507, %v1492
        %vm1509 = vweird.f32 %v1210
        %v1510 = vand.u32 %v1493, 3
        %vm1511 = vcmp.lt.s32.totalorder %v1510, 2
        %vm1512 = vcmp.eq.s32.totalorder %v1510, 0
        %v1513 = vxor.u32 %v1508, 2147483648
        %v1514 = vsel %vm1512, %v1500, %v1513
        %vm1515 = vcmp.eq.s32.totalorder %v1510, 2
        %v1516 = vxor.u32 %v1500, 2147483648
        %v1517 = vsel %vm1515, %v1516, %v1508
        %v1518 = vsel %vm1511, %v1514, %v1517
        %v1519 = vsel %vm1509, nan, %v1518
        %1521 = vst [vmem:[#allocation1] ss:$4 sm:$0xff] %v280
        %v1522 = vld.sshfl [vmem:[#allocation1] sm:$0xff pattern:$0x73625140]
        %v1523 = vld.sshfl [vmem:[#allocation1 + $0x8] sm:$0xff pattern:$0x73625140]
        %s1527 = scalar_lea.vmem [#allocation1], 1
        %1528 = vst [vmem:[%s1527] ss:$4 sm:$0xff] %v435
        %v1529 = vld.sshfl [vmem:[#allocation1] sm:$0xff pattern:$0x73625140]
        %v1530 = vld.sshfl [vmem:[#allocation1 + $0x8] sm:$0xff pattern:$0x73625140]
        %s1534 = scalar_lea.vmem [#allocation1], 2
        %1535 = vst [vmem:[%s1534] ss:$4 sm:$0xff] %v589
        %v1536 = vld.sshfl [vmem:[#allocation1] sm:$0xff pattern:$0x73625140]
        %v1537 = vld.sshfl [vmem:[#allocation1 + $0x8] sm:$0xff pattern:$0x73625140]
        %s1541 = scalar_lea.vmem [#allocation1], 3
        %1542 = vst [vmem:[%s1541] ss:$4 sm:$0xff] %v745
        %v1543 = vld.sshfl [vmem:[#allocation1] sm:$0xff pattern:$0x73625140]
        %v1544 = vld.sshfl [vmem:[#allocation1 + $0x8] sm:$0xff pattern:$0x73625140]
        %1548 = vst [vmem:[#allocation1] ss:$4 sm:$0xff] %v899
        %v1549 = vld.sshfl [vmem:[#allocation1] sm:$0xff pattern:$0x73625140]
        %v1550 = vld.sshfl [vmem:[#allocation1 + $0x8] sm:$0xff pattern:$0x73625140]
        %s1554 = scalar_lea.vmem [#allocation1], 1
        %1555 = vst [vmem:[%s1554] ss:$4 sm:$0xff] %v1055
        %v1556 = vld.sshfl [vmem:[#allocation1] sm:$0xff pattern:$0x73625140]
        %v1557 = vld.sshfl [vmem:[#allocation1 + $0x8] sm:$0xff pattern:$0x73625140]
        %s1561 = scalar_lea.vmem [#allocation1], 2
        %1562 = vst [vmem:[%s1561] ss:$4 sm:$0xff] %v1209
        %v1563 = vld.sshfl [vmem:[#allocation1] sm:$0xff pattern:$0x73625140]
        %v1564 = vld.sshfl [vmem:[#allocation1 + $0x8] sm:$0xff pattern:$0x73625140]
        %s1568 = scalar_lea.vmem [#allocation1], 3
        %1569 = vst [vmem:[%s1568] ss:$4 sm:$0xff] %v1365
        %v1570 = vld.sshfl [vmem:[#allocation1] sm:$0xff pattern:$0x73625140]
        %v1571 = vld.sshfl [vmem:[#allocation1 + $0x8] sm:$0xff pattern:$0x73625140]
        %1575 = vst [vmem:[#allocation1] ss:$4 sm:$0xff] %v1519
        %v1576 = vld.sshfl [vmem:[#allocation1] sm:$0xff pattern:$0x73625140]
        %v1577 = vld.sshfl [vmem:[#allocation1 + $0x8] sm:$0xff pattern:$0x73625140]
        %vm1578 = vcmask 1041408
        %v1579 = vsel %vm1578, %v1522, %v1529
        %v1580 = vsel %vm1578, %v1523, %v1530
        %vm1581 = vcmask 1043456
        %v1582 = vsel %vm1581, %v1579, %v1536
        %v1583 = vsel %vm1581, %v1580, %v1537
        %vm1584 = vcmask 1045504
        %v1585 = vsel %vm1584, %v1582, %v1543
        %v1586 = vsel %vm1584, %v1583, %v1544
        %v1587 = vsel %vm1578, %v1549, %v1556
        %v1588 = vsel %vm1578, %v1550, %v1557
        %v1589 = vsel %vm1581, %v1587, %v1563
        %v1590 = vsel %vm1581, %v1588, %v1564
        %v1591 = vsel %vm1584, %v1589, %v1570
        %v1592 = vsel %vm1584, %v1590, %v1571
        %v1593 = vld [vmem:[%s1] sm:$0xff]
        %v1594 = vld [vmem:[%s1 + $0x8] sm:$0xff]
        %v1595 = vld [vmem:[%s1 + $0x10] sm:$0xff]
        %v1596 = vld [vmem:[%s1 + $0x18] sm:$0xff]
        %v1597 = vld [vmem:[%s2] sm:$0xff]
        %v1598 = vld [vmem:[%s2 + $0x8] sm:$0xff]
        %v1599 = vld [vmem:[%s2 + $0x10] sm:$0xff]
        %v1600 = vld [vmem:[%s2 + $0x18] sm:$0xff]
        %1602 = vset.pattern.permute.xlu0 0
        %1603 = vperm.xlu0 %1602, %v1597
        %v1604 = vpop.permute.xlu0 %1603
        %1607 = vset.pattern.permute.xlu0 0
        %1608 = vperm.xlu0 %1607, %v1598
        %v1609 = vpop.permute.xlu0 %1608
        %1612 = vset.pattern.permute.xlu0 0
        %1613 = vperm.xlu0 %1612, %v1599
        %v1614 = vpop.permute.xlu0 %1613
        %1617 = vset.pattern.permute.xlu0 0
        %1618 = vperm.xlu0 %1617, %v1600
        %v1619 = vpop.permute.xlu0 %1618
        %vm1621 = vcmask 146432
        %v1623 = vsel %vm1621, %v1593, 0
        %v1626 = vsel %vm1621, %v1594, 0
        %v1629 = vsel %vm1621, %v1595, 0
        %v1632 = vsel %vm1621, %v1596, 0
        %v1634 = vsel %vm1578, %v1576, 0
        %v1636 = vsel %vm1578, %v1577, 0
        %1638 = vmatpush.msra.mxu0 0.0
        %1639 = vmatpush.msra.mxu0 0.0
        %1640 = vmatpush.msra.mxu0 0.0
        %1641 = vmatpush.msra.mxu0 0.0
        %1642 = vmatpush.msra.mxu0 0.0
        %1643 = vmatpush.msra.mxu0 0.0
        %1644 = vmatpush.msra.mxu0 0.0
        %1645 = vmatpush.msra.mxu0 0.0
        %1646 = vmatpush.msra.mxu0 0.0
        %1647 = vmatpush.msra.mxu0 0.0
        %1648 = vmatpush.msra.mxu0 0.0
        %1649 = vmatpush.msra.mxu0 0.0
        %1650 = vmatpush.msra.mxu0 0.0
        %1651 = vmatpush.msra.mxu0 %v1634
        %1652 = vmatpush.msra.mxu0 %v1591
        %1653 = vmatpush.msra.mxu0 %v1585
        %1654 = vmatmul.f32.gmra.mxu0 %v1623
        %v1655 = vpop.f32.mrf.mxu0
        %v1656 = vadd.f32 %v1604, %v1655
        %1657 = vmatmul.f32.gmra.mxu0 %v1626
        %v1658 = vpop.f32.mrf.mxu0
        %v1659 = vadd.f32 %v1609, %v1658
        %1660 = vmatmul.f32.gmra.mxu0 %v1629
        %v1661 = vpop.f32.mrf.mxu0
        %v1662 = vadd.f32 %v1614, %v1661
        %1663 = vmatmul.f32.gmra.mxu0 %v1632
        %v1664 = vpop.f32.mrf.mxu0
        %v1665 = vadd.f32 %v1619, %v1664
        %1666 = vdwg.mxu0
        %1667 = vmatpush.msra.mxu0 0.0
        %1668 = vmatpush.msra.mxu0 0.0
        %1669 = vmatpush.msra.mxu0 0.0
        %1670 = vmatpush.msra.mxu0 0.0
        %1671 = vmatpush.msra.mxu0 0.0
        %1672 = vmatpush.msra.mxu0 0.0
        %1673 = vmatpush.msra.mxu0 0.0
        %1674 = vmatpush.msra.mxu0 0.0
        %1675 = vmatpush.msra.mxu0 0.0
        %1676 = vmatpush.msra.mxu0 0.0
        %1677 = vmatpush.msra.mxu0 0.0
        %1678 = vmatpush.msra.mxu0 0.0
        %1679 = vmatpush.msra.mxu0 0.0
        %1680 = vmatpush.msra.mxu0 %v1636
        %1681 = vmatpush.msra.mxu0 %v1592
        %1682 = vmatpush.msra.mxu0 %v1586
        %1683 = vmatmul.f32.gmra.mxu0 %v1623
        %v1684 = vpop.f32.mrf.mxu0
        %v1685 = vadd.f32 %v1604, %v1684
        %1686 = vmatmul.f32.gmra.mxu0 %v1626
        %v1687 = vpop.f32.mrf.mxu0
        %v1688 = vadd.f32 %v1609, %v1687
        %1689 = vmatmul.f32.gmra.mxu0 %v1629
        %v1690 = vpop.f32.mrf.mxu0
        %v1691 = vadd.f32 %v1614, %v1690
        %1692 = vmatmul.f32.gmra.mxu0 %v1632
        %v1693 = vpop.f32.mrf.mxu0
        %v1694 = vadd.f32 %v1619, %v1693
        %1695 = vdwg.mxu0
        %v1696 = vmax.f32 %v1656, 0.0
        %v1697 = vmax.f32 %v1685, 0.0
        %v1698 = vmax.f32 %v1659, 0.0
        %v1699 = vmax.f32 %v1688, 0.0
        %v1700 = vmax.f32 %v1662, 0.0
        %v1701 = vmax.f32 %v1691, 0.0
        %v1702 = vmax.f32 %v1665, 0.0
        %v1703 = vmax.f32 %v1694, 0.0
        %v1704 = vld [vmem:[%s3] sm:$0xff]
        %v1705 = vld [vmem:[%s3 + $0x8] sm:$0xff]
        %v1706 = vld [vmem:[%s3 + $0x10] sm:$0xff]
        %v1707 = vld [vmem:[%s3 + $0x18] sm:$0xff]
        %v1708 = vld [vmem:[%s4] sm:$0xff]
        %v1709 = vld [vmem:[%s4 + $0x8] sm:$0xff]
        %v1710 = vld [vmem:[%s4 + $0x10] sm:$0xff]
        %v1711 = vld [vmem:[%s4 + $0x18] sm:$0xff]
        %1713 = vset.pattern.permute.xlu0 0
        %1714 = vperm.xlu0 %1713, %v1708
        %v1715 = vpop.permute.xlu0 %1714
        %1718 = vset.pattern.permute.xlu0 0
        %1719 = vperm.xlu0 %1718, %v1709
        %v1720 = vpop.permute.xlu0 %1719
        %1723 = vset.pattern.permute.xlu0 0
        %1724 = vperm.xlu0 %1723, %v1710
        %v1725 = vpop.permute.xlu0 %1724
        %1728 = vset.pattern.permute.xlu0 0
        %1729 = vperm.xlu0 %1728, %v1711
        %v1730 = vpop.permute.xlu0 %1729
        %vm1732 = vcmask 261120
        %v1734 = vsel %vm1732, %v1704, 0
        %v1737 = vsel %vm1732, %v1705, 0
        %v1740 = vsel %vm1732, %v1706, 0
        %v1743 = vsel %vm1732, %v1707, 0
        %1745 = vmatpush.msra.mxu0 0.0
        %1746 = vmatpush.msra.mxu0 0.0
        %1747 = vmatpush.msra.mxu0 0.0
        %1748 = vmatpush.msra.mxu0 0.0
        %1749 = vmatpush.msra.mxu0 0.0
        %1750 = vmatpush.msra.mxu0 0.0
        %1751 = vmatpush.msra.mxu0 0.0
        %1752 = vmatpush.msra.mxu0 0.0
        %1753 = vmatpush.msra.mxu0 0.0
        %1754 = vmatpush.msra.mxu0 0.0
        %1755 = vmatpush.msra.mxu0 0.0
        %1756 = vmatpush.msra.mxu0 0.0
        %1757 = vmatpush.msra.mxu0 %v1702
        %1758 = vmatpush.msra.mxu0 %v1700
        %1759 = vmatpush.msra.mxu0 %v1698
        %1760 = vmatpush.msra.mxu0 %v1696
        %1761 = vmatmul.f32.gmra.mxu0 %v1734
        %v1762 = vpop.f32.mrf.mxu0
        %v1763 = vadd.f32 %v1715, %v1762
        %1764 = vmatmul.f32.gmra.mxu0 %v1737
        %v1765 = vpop.f32.mrf.mxu0
        %v1766 = vadd.f32 %v1720, %v1765
        %1767 = vmatmul.f32.gmra.mxu0 %v1740
        %v1768 = vpop.f32.mrf.mxu0
        %v1769 = vadd.f32 %v1725, %v1768
        %1770 = vmatmul.f32.gmra.mxu0 %v1743
        %v1771 = vpop.f32.mrf.mxu0
        %v1772 = vadd.f32 %v1730, %v1771
        %1773 = vdwg.mxu0
        %1774 = vmatpush.msra.mxu0 0.0
        %1775 = vmatpush.msra.mxu0 0.0
        %1776 = vmatpush.msra.mxu0 0.0
        %1777 = vmatpush.msra.mxu0 0.0
        %1778 = vmatpush.msra.mxu0 0.0
        %1779 = vmatpush.msra.mxu0 0.0
        %1780 = vmatpush.msra.mxu0 0.0
        %1781 = vmatpush.msra.mxu0 0.0
        %1782 = vmatpush.msra.mxu0 0.0
        %1783 = vmatpush.msra.mxu0 0.0
        %1784 = vmatpush.msra.mxu0 0.0
        %1785 = vmatpush.msra.mxu0 0.0
        %1786 = vmatpush.msra.mxu0 %v1703
        %1787 = vmatpush.msra.mxu0 %v1701
        %1788 = vmatpush.msra.mxu0 %v1699
        %1789 = vmatpush.msra.mxu0 %v1697
        %1790 = vmatmul.f32.gmra.mxu0 %v1734
        %v1791 = vpop.f32.mrf.mxu0
        %v1792 = vadd.f32 %v1715, %v1791
        %1793 = vmatmul.f32.gmra.mxu0 %v1737
        %v1794 = vpop.f32.mrf.mxu0
        %v1795 = vadd.f32 %v1720, %v1794
        %1796 = vmatmul.f32.gmra.mxu0 %v1740
        %v1797 = vpop.f32.mrf.mxu0
        %v1798 = vadd.f32 %v1725, %v1797
        %1799 = vmatmul.f32.gmra.mxu0 %v1743
        %v1800 = vpop.f32.mrf.mxu0
        %v1801 = vadd.f32 %v1730, %v1800
        %1802 = vdwg.mxu0
        %v1803 = vmax.f32 %v1763, 0.0
        %v1804 = vmax.f32 %v1792, 0.0
        %v1805 = vmax.f32 %v1766, 0.0
        %v1806 = vmax.f32 %v1795, 0.0
        %v1807 = vmax.f32 %v1769, 0.0
        %v1808 = vmax.f32 %v1798, 0.0
        %v1809 = vmax.f32 %v1772, 0.0
        %v1810 = vmax.f32 %v1801, 0.0
        %s1811 = scalar_lea.vmem %s3, 32
        %v1812 = vld [vmem:[%s1811] sm:$0xff]
        %v1813 = vld [vmem:[%s1811 + $0x8] sm:$0xff]
        %v1814 = vld [vmem:[%s1811 + $0x10] sm:$0xff]
        %v1815 = vld [vmem:[%s1811 + $0x18] sm:$0xff]
        %s1816 = scalar_lea.vmem %s4, 32
        %v1817 = vld [vmem:[%s1816] sm:$0xff]
        %v1818 = vld [vmem:[%s1816 + $0x8] sm:$0xff]
        %v1819 = vld [vmem:[%s1816 + $0x10] sm:$0xff]
        %v1820 = vld [vmem:[%s1816 + $0x18] sm:$0xff]
        %1822 = vset.pattern.permute.xlu0 0
        %1823 = vperm.xlu0 %1822, %v1817
        %v1824 = vpop.permute.xlu0 %1823
        %1827 = vset.pattern.permute.xlu0 0
        %1828 = vperm.xlu0 %1827, %v1818
        %v1829 = vpop.permute.xlu0 %1828
        %1832 = vset.pattern.permute.xlu0 0
        %1833 = vperm.xlu0 %1832, %v1819
        %v1834 = vpop.permute.xlu0 %1833
        %1837 = vset.pattern.permute.xlu0 0
        %1838 = vperm.xlu0 %1837, %v1820
        %v1839 = vpop.permute.xlu0 %1838
        %v1842 = vsel %vm1732, %v1812, 0
        %v1845 = vsel %vm1732, %v1813, 0
        %v1848 = vsel %vm1732, %v1814, 0
        %v1851 = vsel %vm1732, %v1815, 0
        %1853 = vmatpush.msra.mxu0 0.0
        %1854 = vmatpush.msra.mxu0 0.0
        %1855 = vmatpush.msra.mxu0 0.0
        %1856 = vmatpush.msra.mxu0 0.0
        %1857 = vmatpush.msra.mxu0 0.0
        %1858 = vmatpush.msra.mxu0 0.0
        %1859 = vmatpush.msra.mxu0 0.0
        %1860 = vmatpush.msra.mxu0 0.0
        %1861 = vmatpush.msra.mxu0 0.0
        %1862 = vmatpush.msra.mxu0 0.0
        %1863 = vmatpush.msra.mxu0 0.0
        %1864 = vmatpush.msra.mxu0 0.0
        %1865 = vmatpush.msra.mxu0 %v1809
        %1866 = vmatpush.msra.mxu0 %v1807
        %1867 = vmatpush.msra.mxu0 %v1805
        %1868 = vmatpush.msra.mxu0 %v1803
        %1869 = vmatmul.f32.gmra.mxu0 %v1842
        %v1870 = vpop.f32.mrf.mxu0
        %v1871 = vadd.f32 %v1824, %v1870
        %1872 = vmatmul.f32.gmra.mxu0 %v1845
        %v1873 = vpop.f32.mrf.mxu0
        %v1874 = vadd.f32 %v1829, %v1873
        %1875 = vmatmul.f32.gmra.mxu0 %v1848
        %v1876 = vpop.f32.mrf.mxu0
        %v1877 = vadd.f32 %v1834, %v1876
        %1878 = vmatmul.f32.gmra.mxu0 %v1851
        %v1879 = vpop.f32.mrf.mxu0
        %v1880 = vadd.f32 %v1839, %v1879
        %1881 = vdwg.mxu0
        %1882 = vmatpush.msra.mxu0 0.0
        %1883 = vmatpush.msra.mxu0 0.0
        %1884 = vmatpush.msra.mxu0 0.0
        %1885 = vmatpush.msra.mxu0 0.0
        %1886 = vmatpush.msra.mxu0 0.0
        %1887 = vmatpush.msra.mxu0 0.0
        %1888 = vmatpush.msra.mxu0 0.0
        %1889 = vmatpush.msra.mxu0 0.0
        %1890 = vmatpush.msra.mxu0 0.0
        %1891 = vmatpush.msra.mxu0 0.0
        %1892 = vmatpush.msra.mxu0 0.0
        %1893 = vmatpush.msra.mxu0 0.0
        %1894 = vmatpush.msra.mxu0 %v1810
        %1895 = vmatpush.msra.mxu0 %v1808
        %1896 = vmatpush.msra.mxu0 %v1806
        %1897 = vmatpush.msra.mxu0 %v1804
        %1898 = vmatmul.f32.gmra.mxu0 %v1842
        %v1899 = vpop.f32.mrf.mxu0
        %v1900 = vadd.f32 %v1824, %v1899
        %1901 = vmatmul.f32.gmra.mxu0 %v1845
        %v1902 = vpop.f32.mrf.mxu0
        %v1903 = vadd.f32 %v1829, %v1902
        %1904 = vmatmul.f32.gmra.mxu0 %v1848
        %v1905 = vpop.f32.mrf.mxu0
        %v1906 = vadd.f32 %v1834, %v1905
        %1907 = vmatmul.f32.gmra.mxu0 %v1851
        %v1908 = vpop.f32.mrf.mxu0
        %v1909 = vadd.f32 %v1839, %v1908
        %1910 = vdwg.mxu0
        %v1911 = vmax.f32 %v1871, 0.0
        %v1912 = vmax.f32 %v1900, 0.0
        %v1913 = vmax.f32 %v1874, 0.0
        %v1914 = vmax.f32 %v1903, 0.0
        %v1915 = vmax.f32 %v1877, 0.0
        %v1916 = vmax.f32 %v1906, 0.0
        %v1917 = vmax.f32 %v1880, 0.0
        %v1918 = vmax.f32 %v1909, 0.0
        %s1919 = scalar_lea.vmem %s3, 64
        %v1920 = vld [vmem:[%s1919] sm:$0xff]
        %v1921 = vld [vmem:[%s1919 + $0x8] sm:$0xff]
        %v1922 = vld [vmem:[%s1919 + $0x10] sm:$0xff]
        %v1923 = vld [vmem:[%s1919 + $0x18] sm:$0xff]
        %s1924 = scalar_lea.vmem %s4, 64
        %v1925 = vld [vmem:[%s1924] sm:$0xff]
        %v1926 = vld [vmem:[%s1924 + $0x8] sm:$0xff]
        %v1927 = vld [vmem:[%s1924 + $0x10] sm:$0xff]
        %v1928 = vld [vmem:[%s1924 + $0x18] sm:$0xff]
        %1930 = vset.pattern.permute.xlu0 0
        %1931 = vperm.xlu0 %1930, %v1925
        %v1932 = vpop.permute.xlu0 %1931
        %1935 = vset.pattern.permute.xlu0 0
        %1936 = vperm.xlu0 %1935, %v1926
        %v1937 = vpop.permute.xlu0 %1936
        %1940 = vset.pattern.permute.xlu0 0
        %1941 = vperm.xlu0 %1940, %v1927
        %v1942 = vpop.permute.xlu0 %1941
        %1945 = vset.pattern.permute.xlu0 0
        %1946 = vperm.xlu0 %1945, %v1928
        %v1947 = vpop.permute.xlu0 %1946
        %v1950 = vsel %vm1732, %v1920, 0
        %v1953 = vsel %vm1732, %v1921, 0
        %v1956 = vsel %vm1732, %v1922, 0
        %v1959 = vsel %vm1732, %v1923, 0
        %1961 = vmatpush.msra.mxu0 0.0
        %1962 = vmatpush.msra.mxu0 0.0
        %1963 = vmatpush.msra.mxu0 0.0
        %1964 = vmatpush.msra.mxu0 0.0
        %1965 = vmatpush.msra.mxu0 0.0
        %1966 = vmatpush.msra.mxu0 0.0
        %1967 = vmatpush.msra.mxu0 0.0
        %1968 = vmatpush.msra.mxu0 0.0
        %1969 = vmatpush.msra.mxu0 0.0
        %1970 = vmatpush.msra.mxu0 0.0
        %1971 = vmatpush.msra.mxu0 0.0
        %1972 = vmatpush.msra.mxu0 0.0
        %1973 = vmatpush.msra.mxu0 %v1917
        %1974 = vmatpush.msra.mxu0 %v1915
        %1975 = vmatpush.msra.mxu0 %v1913
        %1976 = vmatpush.msra.mxu0 %v1911
        %1977 = vmatmul.f32.gmra.mxu0 %v1950
        %v1978 = vpop.f32.mrf.mxu0
        %v1979 = vadd.f32 %v1932, %v1978
        %1980 = vmatmul.f32.gmra.mxu0 %v1953
        %v1981 = vpop.f32.mrf.mxu0
        %v1982 = vadd.f32 %v1937, %v1981
        %1983 = vmatmul.f32.gmra.mxu0 %v1956
        %v1984 = vpop.f32.mrf.mxu0
        %v1985 = vadd.f32 %v1942, %v1984
        %1986 = vmatmul.f32.gmra.mxu0 %v1959
        %v1987 = vpop.f32.mrf.mxu0
        %v1988 = vadd.f32 %v1947, %v1987
        %1989 = vdwg.mxu0
        %1990 = vmatpush.msra.mxu0 0.0
        %1991 = vmatpush.msra.mxu0 0.0
        %1992 = vmatpush.msra.mxu0 0.0
        %1993 = vmatpush.msra.mxu0 0.0
        %1994 = vmatpush.msra.mxu0 0.0
        %1995 = vmatpush.msra.mxu0 0.0
        %1996 = vmatpush.msra.mxu0 0.0
        %1997 = vmatpush.msra.mxu0 0.0
        %1998 = vmatpush.msra.mxu0 0.0
        %1999 = vmatpush.msra.mxu0 0.0
        %2000 = vmatpush.msra.mxu0 0.0
        %2001 = vmatpush.msra.mxu0 0.0
        %2002 = vmatpush.msra.mxu0 %v1918
        %2003 = vmatpush.msra.mxu0 %v1916
        %2004 = vmatpush.msra.mxu0 %v1914
        %2005 = vmatpush.msra.mxu0 %v1912
        %2006 = vmatmul.f32.gmra.mxu0 %v1950
        %v2007 = vpop.f32.mrf.mxu0
        %v2008 = vadd.f32 %v1932, %v2007
        %2009 = vmatmul.f32.gmra.mxu0 %v1953
        %v2010 = vpop.f32.mrf.mxu0
        %v2011 = vadd.f32 %v1937, %v2010
        %2012 = vmatmul.f32.gmra.mxu0 %v1956
        %v2013 = vpop.f32.mrf.mxu0
        %v2014 = vadd.f32 %v1942, %v2013
        %2015 = vmatmul.f32.gmra.mxu0 %v1959
        %v2016 = vpop.f32.mrf.mxu0
        %v2017 = vadd.f32 %v1947, %v2016
        %2018 = vdwg.mxu0
        %v2019 = vmax.f32 %v1979, 0.0
        %v2020 = vmax.f32 %v2008, 0.0
        %v2021 = vmax.f32 %v1982, 0.0
        %v2022 = vmax.f32 %v2011, 0.0
        %v2023 = vmax.f32 %v1985, 0.0
        %v2024 = vmax.f32 %v2014, 0.0
        %v2025 = vmax.f32 %v1988, 0.0
        %v2026 = vmax.f32 %v2017, 0.0
        %v2027 = vld [vmem:[%s5] sm:$0x7]
        %v2028 = vld [vmem:[%s6] sm:$0x7]
        %2030 = vset.pattern.permute.xlu0 0
        %2031 = vperm.xlu0 %2030, %v2028
        %v2032 = vpop.permute.xlu0 %2031
        %v2035 = vsel %vm1732, %v2027, 0
        %2037 = vmatpush.msra.mxu0 0.0
        %2038 = vmatpush.msra.mxu0 0.0
        %2039 = vmatpush.msra.mxu0 0.0
        %2040 = vmatpush.msra.mxu0 0.0
        %2041 = vmatpush.msra.mxu0 0.0
        %2042 = vmatpush.msra.mxu0 0.0
        %2043 = vmatpush.msra.mxu0 0.0
        %2044 = vmatpush.msra.mxu0 0.0
        %2045 = vmatpush.msra.mxu0 0.0
        %2046 = vmatpush.msra.mxu0 0.0
        %2047 = vmatpush.msra.mxu0 0.0
        %2048 = vmatpush.msra.mxu0 0.0
        %2049 = vmatpush.msra.mxu0 %v2025
        %2050 = vmatpush.msra.mxu0 %v2023
        %2051 = vmatpush.msra.mxu0 %v2021
        %2052 = vmatpush.msra.mxu0 %v2019
        %2053 = vmatmul.f32.gmra.mxu0 %v2035
        %v2054 = vpop.f32.mrf.mxu0
        %v2055 = vadd.f32 %v2032, %v2054
        %2056 = vdwg.mxu0
        %2057 = vmatpush.msra.mxu0 0.0
        %2058 = vmatpush.msra.mxu0 0.0
        %2059 = vmatpush.msra.mxu0 0.0
        %2060 = vmatpush.msra.mxu0 0.0
        %2061 = vmatpush.msra.mxu0 0.0
        %2062 = vmatpush.msra.mxu0 0.0
        %2063 = vmatpush.msra.mxu0 0.0
        %2064 = vmatpush.msra.mxu0 0.0
        %2065 = vmatpush.msra.mxu0 0.0
        %2066 = vmatpush.msra.mxu0 0.0
        %2067 = vmatpush.msra.mxu0 0.0
        %2068 = vmatpush.msra.mxu0 0.0
        %2069 = vmatpush.msra.mxu0 %v2026
        %2070 = vmatpush.msra.mxu0 %v2024
        %2071 = vmatpush.msra.mxu0 %v2022
        %2072 = vmatpush.msra.mxu0 %v2020
        %2073 = vmatmul.f32.gmra.mxu0 %v2035
        %v2074 = vpop.f32.mrf.mxu0
        %v2075 = vadd.f32 %v2032, %v2074
        %2076 = vdwg.mxu0
        %v2077 = vxor.u32 %v2055, 2147483648
        %v2078 = vxor.u32 %v2075, 2147483648
        %v2079 = vmul.f32 %v2077, 1.442695
        %v2080 = vpow.pop %v2079
        %v2081 = vmul.f32 %v2078, 1.442695
        %v2082 = vpow.pop %v2081
        %v2083 = vadd.f32 %v2080, 1.0
        %v2084 = vadd.f32 %v2082, 1.0
        %v2085 = vrcp.pop %v2083
        %v2086 = vmul.f32 %v2083, %v2085
        %v2087 = vsub.f32 1.0, %v2086
        %v2088 = vmul.f32 %v2085, %v2087
        %v2089 = vadd.f32 %v2085, %v2088
        %vm2090 = vweird.f32 %v2083
        %vm2091 = vweird.f32 %v2085
        %vm2092 = vmor %vm2090, %vm2091
        %v2093 = vsel %vm2092, %v2085, %v2089
        %v2094 = vand.u32 2147483647, %v2083
        %vm2095 = vcmp.eq.f32.partialorder %v2094, 8.507059e+37
        %v2096 = vand.u32 %v2083, 2147483648
        %v2097 = vor.u32 1.1754944e-38, %v2096
        %v2098 = vsel %vm2095, %v2097, %v2093
        %v2099 = vmul.f32 1.0, %v2098
        %v2100 = vrcp.pop %v2084
        %v2101 = vmul.f32 %v2084, %v2100
        %v2102 = vsub.f32 1.0, %v2101
        %v2103 = vmul.f32 %v2100, %v2102
        %v2104 = vadd.f32 %v2100, %v2103
        %vm2105 = vweird.f32 %v2084
        %vm2106 = vweird.f32 %v2100
        %vm2107 = vmor %vm2105, %vm2106
        %v2108 = vsel %vm2107, %v2100, %v2104
        %v2109 = vand.u32 2147483647, %v2084
        %vm2110 = vcmp.eq.f32.partialorder %v2109, 8.507059e+37
        %v2111 = vand.u32 %v2084, 2147483648
        %v2112 = vor.u32 1.1754944e-38, %v2111
        %v2113 = vsel %vm2110, %v2112, %v2108
        %v2114 = vmul.f32 1.0, %v2113
        %v2117 = vrot.slane %v2114, 4
        %v2118 = vsel %vm1581, %v2099, %v2117
        %2120 = vst [vmem:[%s272] sm:$0x77] %v2118
        %s2121 = sand.u32 %s181, 1
        %s2122 = scalar_lea.sflag [#allocation3], %s2121
        %s2123 = sand.u32 %s181, 1
        %s2124 = smul.addr %s2123, 8
        %s2125 = scalar_lea.vmem [#allocation2], %s2124
        // Predicated region
        $region49: #{tpu_custom_call.1} parent=47 // pred_check
          %p2126 = pneg %p191
        $region50: #{tpu_custom_call.1} parent=47 // pred_check_branch
          %2128 = sbr.rel (%p2126) target = $region52
        $region51: #{tpu_custom_call.1} parent=47 // pred_region
          %s2129 = smul.u32 2, %s21
          %2131 = vsyncadd %s2122, 0
          %s2132 = smul.addr %s2129, 4
          %s2133 = scalar_lea.hbm %s7, %s2132
          %s2135 = sshll.u32 %s2125, 4
          %s2136 = int_to_ptr.vmem [resolvable:$true] %s2135
          %s2137 = sshll.u32 %s2133, 4
          %s2138 = int_to_ptr.hbm [resolvable:$true] %s2137
          %2140 = dma.vmem_to_hbm [thread:$0]  %s2136, 128, %s2138, %s2122
        $region52: #{tpu_custom_call.1} parent=47 // pred_fallthru
          _
      $region48: #{tpu_custom_call.1} parent=5 // pred_fallthru
        _
      %p2141 = scmp.le.s32.totalorder 2, %s16
      // Predicated region
      $region53: #{tpu_custom_call.1} parent=5 // pred_check
        %p2142 = pneg %p2141
      $region54: #{tpu_custom_call.1} parent=5 // pred_check_branch
        %2144 = sbr.rel (%p2142) target = $region56
      $region55: #{tpu_custom_call.1} parent=5 // pred_region
        %s2145 = ssub.s32 %s16, 2
        // Predicated region
        $region57: #{tpu_custom_call.1} parent=55 // pred_check
          %p2146 = pneg %p197
        $region58: #{tpu_custom_call.1} parent=55 // pred_check_branch
          %2148 = sbr.rel (%p2146) target = $region60
        $region59: #{tpu_custom_call.1} parent=55 // pred_region
          %s2149 = sand.u32 %s182, 1
          %s2150 = scalar_lea.sflag [#allocation3], %s2149
          %s2151 = sand.u32 %s182, 1
          %s2152 = smul.addr %s2151, 8
          %s2153 = scalar_lea.vmem [#allocation2], %s2152
          %2155 = dma.done %s2150, 128
        $region60: #{tpu_custom_call.1} parent=55 // pred_fallthru
          _
      $region56: #{tpu_custom_call.1} parent=5 // pred_fallthru
        _
    $region6: #{tpu_custom_call.1} parent=1 // loop_footer
      %s20 = sadd.s32 1, %s16
    $region7: #{tpu_custom_call.1} parent=1 // loop_footer_branch
      %15 = sbr.rel target = $region3
    $region8: #{tpu_custom_call.1} parent=1 // loop_exit
      _
    %2156 = vsyncpa [#allocation3], 1
    %s2157 = scalar_lea.sflag [#allocation3], 1
    %2158 = vsyncpa %s2157, 1

</llo_original>
